<compile_context>
chip_gen: v5e
topology: v5e:2x2
jax: 0.10.0
libtpu: 0.0.40
codegen_flags: <defaults>
</compile_context>

<pallas_src>
import math

import jax
import jax.numpy as jnp
from jax.experimental import pallas as pl
from jax.experimental.pallas import tpu as pltpu

# ---- model dims (small, consistent with a tiny decoder block) ----------------
B = 2            # batch
S = 8            # sequence length
H = 32           # hidden size
NUM_HEADS = 2
HEAD_DIM = H // NUM_HEADS   # 16
INTER = 64       # MLP intermediate size
NUM_BLOCKS = 2   # number of blocks added to MultiBlock
LN_EPS = 1e-5


# ---- fused multi-block decoder kernel -----------------------------------------
def multiblock_kernel(x_ref, mask_ref, cos_ref, sin_ref,
                      wqkv_ref, wo_ref, w1_ref, w2_ref, lnp_ref, o_ref):
    """Whole MultiBlock forward in one kernel invocation (no grid).

    x_ref    : (B*S, H)   hidden states (rows flattened as (b, s))
    mask_ref : (B, S, S)  additive attention mask
    cos_ref  : (B*S, H)   RoPE cos, tiled per head to full width
    sin_ref  : (B*S, H)   RoPE sin, tiled per head to full width
    wqkv_ref : (NB, H, 5H) columns = [q*scale | rot_half(q)*scale | k | rot_half(k) | v]
    wo_ref   : (NB, NH, HEAD_DIM, H) output projection, pre-split per head
    w1_ref   : (NB, H, INTER), w2_ref: (NB, INTER, H)
    lnp_ref  : (NB, 4, H) packed [g1, b1, g2, b2]
    """
    bs, hdim = x_ref.shape
    b, s, _ = mask_ref.shape
    nb = wqkv_ref.shape[0]
    nheads, hd = wo_ref.shape[1], wo_ref.shape[2]
    f32 = jnp.float32

    h = x_ref[...].astype(f32)            # (B*S, H) hidden state carried in regs/VMEM
    cos = cos_ref[...]
    sin = sin_ref[...]
    mask = mask_ref[...]                  # (B, S, S)

    def layer_norm(t, gamma, beta):       # gamma/beta are 2-D (1, H) rows
        mu = jnp.mean(t, axis=-1, keepdims=True)
        var = jnp.mean((t - mu) ** 2, axis=-1, keepdims=True)
        return (t - mu) * jax.lax.rsqrt(var + LN_EPS) * gamma + beta

    for blk in range(nb):                 # static unroll; all weights VMEM-resident
        lnb = lnp_ref[blk]                # (4, H)
        g1, b1 = lnb[0:1], lnb[1:2]       # keep 2-D (1, H) rows (no 1-D relayout)
        g2, b2 = lnb[2:3], lnb[3:4]

        # ---- pre-attention LN + fused QKV projection (one MXU dot) ----
        xn = layer_norm(h, g1, b1)
        proj = jnp.dot(xn, wqkv_ref[blk], preferred_element_type=f32)   # (B*S, 5H)

        # Full-width RoPE: rotate_half is folded into the weight columns, so RoPE
        # is just two full-row FMAs per operand (no per-head lane shuffles).
        q = proj[:, 0 * hdim:1 * hdim] * cos + proj[:, 1 * hdim:2 * hdim] * sin
        k = proj[:, 2 * hdim:3 * hdim] * cos + proj[:, 3 * hdim:4 * hdim] * sin
        v = proj[:, 4 * hdim:5 * hdim]

        q3 = q.reshape(b, s, hdim)        # leading-dim split only (free)
        k3 = k.reshape(b, s, hdim)
        v3 = v.reshape(b, s, hdim)

        attn = None
        for hh in range(nheads):          # static unroll (NUM_HEADS == 2)
            lo = hh * hd
            qh = q3[:, :, lo:lo + hd]     # (B, S, hd)
            kh = k3[:, :, lo:lo + hd]
            vh = v3[:, :, lo:lo + hd]
            # one batched MXU dot over B per head (no per-batch Python loop)
            scores = jnp.einsum('bqd,bkd->bqk', qh, kh,
                                preferred_element_type=f32) + mask      # (B, S, S)
            m = jnp.max(scores, axis=-1, keepdims=True)
            p = jnp.exp(scores - m)
            denom = jnp.sum(p, axis=-1, keepdims=True)
            p = p * pl.reciprocal(denom, approx=True)                   # EUP vrcp
            ctx = jnp.einsum('bqk,bkd->bqd', p, vh,
                             preferred_element_type=f32)                # (B, S, hd)
            # accumulate head output straight through its wo slice (no concat)
            wo_b = wo_ref[blk]                                          # (NH, hd, H)
            part = jnp.dot(ctx.reshape(bs, hd), wo_b[hh],
                           preferred_element_type=f32)                  # (B*S, H)
            attn = part if attn is None else attn + part
        h = h + attn                                                    # residual 1

        # ---- pre-MLP LN + MLP ----
        hn = layer_norm(h, g2, b2)
        # TODO(synk): PyTorch nn.GELU default is exact erf; switch to
        # jax.nn.gelu(..., approximate=False) if erf lowering is required.
        up = jax.nn.gelu(jnp.dot(hn, w1_ref[blk], preferred_element_type=f32))
        h = h + jnp.dot(up, w2_ref[blk], preferred_element_type=f32)    # residual 2

    o_ref[...] = h.astype(o_ref.dtype)


def _fused_multiblock_call(x, mask, cos, sin, wqkv, wo_h, w1, w2, lnp):
    b, s, hdim = x.shape
    bs = b * s
    x2d = x.reshape(bs, hdim)
    # tile RoPE tables per head to full H width so the kernel applies RoPE on
    # whole (B*S, H) slabs (computed once per forward; hoisted out of the kernel)
    cos2d = jnp.tile(cos, (1, 1, NUM_HEADS)).reshape(bs, hdim)
    sin2d = jnp.tile(sin, (1, 1, NUM_HEADS)).reshape(bs, hdim)

    def vmem():
        return pl.BlockSpec(memory_space=pltpu.MemorySpace.VMEM)

    out2d = pl.pallas_call(
        multiblock_kernel,
        out_shape=jax.ShapeDtypeStruct((bs, hdim), x.dtype),
        in_specs=[vmem() for _ in range(9)],
        out_specs=vmem(),
    )(x2d, mask, cos2d, sin2d, wqkv, wo_h, w1, w2, lnp)
    return out2d.reshape(b, s, hdim)


# ---- plain-JAX glue ------------------------------------------------------------
def _rope_tables(position_ids, head_dim):
    pos = position_ids.astype(jnp.float32)                                 # (B, S)
    inv_freq = 1.0 / (10000.0 ** (jnp.arange(0, head_dim, 2, dtype=jnp.float32)
                                  / head_dim))                             # (hd/2,)
    angles = pos[:, :, None] * inv_freq[None, None, :]                     # (B, S, hd/2)
    emb = jnp.concatenate([angles, angles], axis=-1)                       # (B, S, hd)
    return jnp.cos(emb), jnp.sin(emb)


def _rot_half_matrix(hd):
    # rotate_half(q) == q @ P  with  P = [[0, I], [-I, 0]]
    half = hd // 2
    eye = jnp.eye(half, dtype=jnp.float32)
    zero = jnp.zeros((half, half), jnp.float32)
    return jnp.concatenate(
        [jnp.concatenate([zero, eye], axis=1),
         jnp.concatenate([-eye, zero], axis=1)], axis=0)


def _stack_block_params(blocks):
    scale = 1.0 / math.sqrt(HEAD_DIM)
    rot = jnp.kron(jnp.eye(NUM_HEADS, dtype=jnp.float32),
                   _rot_half_matrix(HEAD_DIM))                 # (H, H) block-diag
    wqkv, wo_h, w1, w2, lnp = [], [], [], [], []
    for prm in blocks:
        wq = prm["wq"] * scale                 # fold 1/sqrt(hd) into q projection
        wqr = (prm["wq"] @ rot) * scale        # rotate_half folded into the weights
        wk = prm["wk"]
        wkr = prm["wk"] @ rot
        wqkv.append(jnp.concatenate([wq, wqr, wk, wkr, prm["wv"]], axis=1))  # (H, 5H)
        wo_h.append(prm["wo"].reshape(NUM_HEADS, HEAD_DIM, H))
        w1.append(prm["w1"])
        w2.append(prm["w2"])
        lnp.append(jnp.stack([prm["g1"], prm["b1"], prm["g2"], prm["b2"]], axis=0))
    # TODO(synk): cast stacked weights to bf16 (keeping LN/softmax math in f32)
    # once dims are realistic -- bf16-native MXU + half the weight DMA bytes.
    return (jnp.stack(wqkv), jnp.stack(wo_h),
            jnp.stack(w1), jnp.stack(w2), jnp.stack(lnp))


# ---- MultiBlock: faithful port of the PyTorch container ------------------------
class MultiBlock:
    """Sequential container.  Semantically identical to looping
    hidden = block(hidden, mask, pos)[0] over block_list; implemented as ONE
    grid-less fused pallas_call with the block loop unrolled in-kernel."""

    def __init__(self):
        self.block_list = []

    def add_block(self, block_params):
        self.block_list.append(block_params)

    def __call__(self, hidden_states, attention_mask=None, position_ids=None):
        if not self.block_list:
            return (hidden_states,)
        b, s, _ = hidden_states.shape
        if attention_mask is None:
            mask = jnp.zeros((b, s, s), jnp.float32)
        else:
            am = attention_mask
            if am.ndim == 4:
                # TODO(synk): assumes the (B,1,S,S) mask's head axis is broadcastable
                am = am[:, 0]
            mask = am.astype(jnp.float32)                      # (B, S, S) additive
        if position_ids is None:
            position_ids = jnp.broadcast_to(jnp.arange(s, dtype=jnp.int32), (b, s))
        cos, sin = _rope_tables(position_ids, HEAD_DIM)        # computed once (hoisted)
        wqkv, wo_h, w1, w2, lnp = _stack_block_params(self.block_list)
        out = _fused_multiblock_call(hidden_states, mask, cos, sin,
                                     wqkv, wo_h, w1, w2, lnp)
        return (out,)


# ---- deterministic synthetic block parameters ----------------------------------
def make_block_params(key):
    ks = jax.random.split(key, 6)
    sc = 1.0 / math.sqrt(H)
    return {
        "wq": jax.random.normal(ks[0], (H, H), jnp.float32) * sc,
        "wk": jax.random.normal(ks[1], (H, H), jnp.float32) * sc,
        "wv": jax.random.normal(ks[2], (H, H), jnp.float32) * sc,
        "wo": jax.random.normal(ks[3], (H, H), jnp.float32) * sc,
        "w1": jax.random.normal(ks[4], (H, INTER), jnp.float32) * sc,
        "w2": jax.random.normal(ks[5], (INTER, H), jnp.float32) / math.sqrt(INTER),
        "g1": jnp.ones((H,), jnp.float32),
        "b1": jnp.zeros((H,), jnp.float32),
        "g2": jnp.ones((H,), jnp.float32),
        "b2": jnp.zeros((H,), jnp.float32),
    }


# ---- pure-JAX reference (mirrors the kernel math, unfused weights) --------------
def block_ref(x, mask, position_ids, params):
    cos, sin = _rope_tables(position_ids, HEAD_DIM)

    def ln(t, g, bb):
        mu = jnp.mean(t, -1, keepdims=True)
        var = jnp.mean((t - mu) ** 2, -1, keepdims=True)
        return (t - mu) * jax.lax.rsqrt(var + LN_EPS) * g + bb

    xn = ln(x, params["g1"], params["b1"])
    q = xn @ params["wq"]; k = xn @ params["wk"]; v = xn @ params["wv"]

    def rope(t, c, s_):
        t1, t2 = t[..., : HEAD_DIM // 2], t[..., HEAD_DIM // 2:]
        return t * c + jnp.concatenate([-t2, t1], -1) * s_

    outs = []
    for hidx in range(NUM_HEADS):
        lo, hi = hidx * HEAD_DIM, (hidx + 1) * HEAD_DIM
        qh = rope(q[..., lo:hi], cos, sin)
        kh = rope(k[..., lo:hi], cos, sin)
        vh = v[..., lo:hi]
        sc = jnp.einsum("bqd,bkd->bqk", qh, kh) / math.sqrt(HEAD_DIM) + mask[:, 0]
        p = jax.nn.softmax(sc, axis=-1)
        outs.append(jnp.einsum("bqk,bkd->bqd", p, vh))
    h = x + jnp.concatenate(outs, -1) @ params["wo"]
    hn = ln(h, params["g2"], params["b2"])
    return h + jax.nn.gelu(hn @ params["w1"]) @ params["w2"]


if __name__ == "__main__":
    key = jax.random.PRNGKey(0)
    kx, *kblocks = jax.random.split(key, 1 + NUM_BLOCKS)

    hidden_states = jax.random.normal(kx, (B, S, H), jnp.float32)
    causal = jnp.tril(jnp.ones((S, S), bool))
    attention_mask = jnp.where(causal, 0.0, -1e9).astype(jnp.float32)
    attention_mask = jnp.broadcast_to(attention_mask, (B, 1, S, S))
    position_ids = jnp.broadcast_to(jnp.arange(S, dtype=jnp.int32), (B, S))

    multi = MultiBlock()
    all_params = []
    for kb in kblocks:
        prm = make_block_params(kb)
        all_params.append(prm)
        multi.add_block(prm)

    (out,) = multi(hidden_states, attention_mask=attention_mask,
                   position_ids=position_ids)
    out = jax.block_until_ready(out)

    # sanity check against a pure-JAX reference of the same math
    # (tolerance loosened because the kernel uses approx EUP reciprocal in softmax)
    ref = hidden_states
    for prm in all_params:
        ref = block_ref(ref, attention_mask, position_ids, prm)
    assert out.shape == (B, S, H)
    assert jnp.allclose(out, ref, atol=1e-2, rtol=1e-2), "mismatch vs reference"

    print("KERNEL_OK")
</pallas_src>

<mosaic_0001>
module attributes {stable_mosaic.version = 11 : i64} {
  func.func @multiblock_kernel(%arg0: memref<16x32xf32, #tpu.memory_space<vmem>>, %arg1: memref<2x8x8xf32, #tpu.memory_space<vmem>>, %arg2: memref<16x32xf32, #tpu.memory_space<vmem>>, %arg3: memref<16x32xf32, #tpu.memory_space<vmem>>, %arg4: memref<2x32x160xf32, #tpu.memory_space<vmem>>, %arg5: memref<2x2x16x32xf32, #tpu.memory_space<vmem>>, %arg6: memref<2x32x64xf32, #tpu.memory_space<vmem>>, %arg7: memref<2x64x32xf32, #tpu.memory_space<vmem>>, %arg8: memref<2x4x32xf32, #tpu.memory_space<vmem>>, %arg9: memref<16x32xf32, #tpu.memory_space<vmem>>) attributes {dimension_semantics = [], scalar_prefetch = 0 : i64, scratch_operands = 0 : i64, tpu.core_type = #tpu.core_type<tc>} {
    %c0 = arith.constant 0 : index
    %c0_0 = arith.constant 0 : index
    %0 = vector.load %arg0[%c0, %c0_0] : memref<16x32xf32, #tpu.memory_space<vmem>>, vector<16x32xf32>
    %c0_1 = arith.constant 0 : index
    %c0_2 = arith.constant 0 : index
    %1 = vector.load %arg2[%c0_1, %c0_2] : memref<16x32xf32, #tpu.memory_space<vmem>>, vector<16x32xf32>
    %c0_3 = arith.constant 0 : index
    %c0_4 = arith.constant 0 : index
    %2 = vector.load %arg3[%c0_3, %c0_4] : memref<16x32xf32, #tpu.memory_space<vmem>>, vector<16x32xf32>
    %c0_5 = arith.constant 0 : index
    %c0_6 = arith.constant 0 : index
    %c0_7 = arith.constant 0 : index
    %3 = vector.load %arg1[%c0_5, %c0_6, %c0_7] : memref<2x8x8xf32, #tpu.memory_space<vmem>>, vector<2x8x8xf32>
    %c0_8 = arith.constant 0 : index
    %c0_9 = arith.constant 0 : index
    %c0_10 = arith.constant 0 : index
    %4 = vector.load %arg8[%c0_8, %c0_9, %c0_10] : memref<2x4x32xf32, #tpu.memory_space<vmem>>, vector<1x4x32xf32>
    %5 = vector.shape_cast %4 : vector<1x4x32xf32> to vector<4x32xf32>
    %6 = vector.extract_strided_slice %5 {offsets = [0, 0], sizes = [1, 32], strides = [1, 1]} : vector<4x32xf32> to vector<1x32xf32>
    %7 = vector.extract_strided_slice %5 {offsets = [1, 0], sizes = [1, 32], strides = [1, 1]} : vector<4x32xf32> to vector<1x32xf32>
    %8 = vector.extract_strided_slice %5 {offsets = [2, 0], sizes = [1, 32], strides = [1, 1]} : vector<4x32xf32> to vector<1x32xf32>
    %9 = vector.extract_strided_slice %5 {offsets = [3, 0], sizes = [1, 32], strides = [1, 1]} : vector<4x32xf32> to vector<1x32xf32>
    %cst = arith.constant dense<0.000000e+00> : vector<16xf32>
    %10 = vector.multi_reduction <add>, %0, %cst [1] : vector<16x32xf32> to vector<16xf32>
    %11 = vector.shape_cast %10 : vector<16xf32> to vector<16x1xf32>
    %cst_11 = arith.constant 3.200000e+01 : f32
    %12 = vector.broadcast %cst_11 : f32 to vector<16x1xf32>
    %13 = arith.divf %11, %12 : vector<16x1xf32>
    %14 = vector.broadcast %13 : vector<16x1xf32> to vector<16x32xf32>
    %15 = arith.subf %0, %14 : vector<16x32xf32>
    %16 = arith.mulf %15, %15 : vector<16x32xf32>
    %cst_12 = arith.constant dense<0.000000e+00> : vector<16xf32>
    %17 = vector.multi_reduction <add>, %16, %cst_12 [1] : vector<16x32xf32> to vector<16xf32>
    %18 = vector.shape_cast %17 : vector<16xf32> to vector<16x1xf32>
    %cst_13 = arith.constant 3.200000e+01 : f32
    %19 = vector.broadcast %cst_13 : f32 to vector<16x1xf32>
    %20 = arith.divf %18, %19 : vector<16x1xf32>
    %21 = vector.broadcast %13 : vector<16x1xf32> to vector<16x32xf32>
    %22 = arith.subf %0, %21 : vector<16x32xf32>
    %cst_14 = arith.constant 9.99999974E-6 : f32
    %23 = vector.broadcast %cst_14 : f32 to vector<16x1xf32>
    %24 = arith.addf %20, %23 : vector<16x1xf32>
    %25 = math.rsqrt %24 : vector<16x1xf32>
    %26 = vector.broadcast %25 : vector<16x1xf32> to vector<16x32xf32>
    %27 = arith.mulf %22, %26 : vector<16x32xf32>
    %28 = vector.broadcast %6 : vector<1x32xf32> to vector<16x32xf32>
    %29 = arith.mulf %27, %28 : vector<16x32xf32>
    %30 = vector.broadcast %7 : vector<1x32xf32> to vector<16x32xf32>
    %31 = arith.addf %29, %30 : vector<16x32xf32>
    %c0_15 = arith.constant 0 : index
    %c0_16 = arith.constant 0 : index
    %c0_17 = arith.constant 0 : index
    %32 = vector.load %arg4[%c0_15, %c0_16, %c0_17] : memref<2x32x160xf32, #tpu.memory_space<vmem>>, vector<1x32x160xf32>
    %33 = vector.shape_cast %32 : vector<1x32x160xf32> to vector<32x160xf32>
    %cst_18 = arith.constant dense<0.000000e+00> : vector<16x160xf32>
    %34 = tpu.matmul %31, %33, %cst_18 {dimension_numbers = #tpu.dot_dimension_numbers<[1], [0], [0], [1], [0, 0, 1, 1], [], []>} : vector<16x32xf32>, vector<32x160xf32>, vector<16x160xf32> -> vector<16x160xf32>
    %35 = vector.extract_strided_slice %34 {offsets = [0, 0], sizes = [16, 32], strides = [1, 1]} : vector<16x160xf32> to vector<16x32xf32>
    %36 = arith.mulf %35, %1 : vector<16x32xf32>
    %37 = vector.extract_strided_slice %34 {offsets = [0, 32], sizes = [16, 32], strides = [1, 1]} : vector<16x160xf32> to vector<16x32xf32>
    %38 = arith.mulf %37, %2 : vector<16x32xf32>
    %39 = arith.addf %36, %38 : vector<16x32xf32>
    %40 = vector.extract_strided_slice %34 {offsets = [0, 64], sizes = [16, 32], strides = [1, 1]} : vector<16x160xf32> to vector<16x32xf32>
    %41 = arith.mulf %40, %1 : vector<16x32xf32>
    %42 = vector.extract_strided_slice %34 {offsets = [0, 96], sizes = [16, 32], strides = [1, 1]} : vector<16x160xf32> to vector<16x32xf32>
    %43 = arith.mulf %42, %2 : vector<16x32xf32>
    %44 = arith.addf %41, %43 : vector<16x32xf32>
    %45 = vector.extract_strided_slice %34 {offsets = [0, 128], sizes = [16, 32], strides = [1, 1]} : vector<16x160xf32> to vector<16x32xf32>
    %46 = vector.shape_cast %39 : vector<16x32xf32> to vector<2x8x32xf32>
    %47 = vector.shape_cast %44 : vector<16x32xf32> to vector<2x8x32xf32>
    %48 = vector.shape_cast %45 : vector<16x32xf32> to vector<2x8x32xf32>
    %49 = vector.extract_strided_slice %46 {offsets = [0, 0, 0], sizes = [2, 8, 16], strides = [1, 1, 1]} : vector<2x8x32xf32> to vector<2x8x16xf32>
    %50 = vector.extract_strided_slice %47 {offsets = [0, 0, 0], sizes = [2, 8, 16], strides = [1, 1, 1]} : vector<2x8x32xf32> to vector<2x8x16xf32>
    %51 = vector.extract_strided_slice %48 {offsets = [0, 0, 0], sizes = [2, 8, 16], strides = [1, 1, 1]} : vector<2x8x32xf32> to vector<2x8x16xf32>
    "tpu.trace_start"() <{level = 10 : i32, message = "bqd,bkd->bqk"}> : () -> ()
    %cst_19 = arith.constant dense<0.000000e+00> : vector<2x8x8xf32>
    %52 = tpu.matmul %49, %50, %cst_19 {dimension_numbers = #tpu.dot_dimension_numbers<[2], [2], [1], [1], [0, 0, 0, 1, 1, 1], [0], [0]>} : vector<2x8x16xf32>, vector<2x8x16xf32>, vector<2x8x8xf32> -> vector<2x8x8xf32>
    "tpu.trace_stop"() : () -> ()
    %53 = arith.addf %52, %3 : vector<2x8x8xf32>
    %cst_20 = arith.constant dense<0xFF800000> : vector<2x8xf32>
    %54 = vector.multi_reduction <maximumf>, %53, %cst_20 [2] : vector<2x8x8xf32> to vector<2x8xf32>
    %55 = vector.shape_cast %54 : vector<2x8xf32> to vector<2x8x1xf32>
    %56 = vector.broadcast %55 : vector<2x8x1xf32> to vector<2x8x8xf32>
    %57 = arith.subf %53, %56 : vector<2x8x8xf32>
    %58 = math.exp %57 : vector<2x8x8xf32>
    %cst_21 = arith.constant dense<0.000000e+00> : vector<2x8xf32>
    %59 = vector.multi_reduction <add>, %58, %cst_21 [2] : vector<2x8x8xf32> to vector<2x8xf32>
    %60 = vector.shape_cast %59 : vector<2x8xf32> to vector<2x8x1xf32>
    %61 = tpu.reciprocal %60 {approx = true} : vector<2x8x1xf32> -> vector<2x8x1xf32>
    %62 = vector.broadcast %61 : vector<2x8x1xf32> to vector<2x8x8xf32>
    %63 = arith.mulf %58, %62 : vector<2x8x8xf32>
    "tpu.trace_start"() <{level = 10 : i32, message = "bqk,bkd->bqd"}> : () -> ()
    %cst_22 = arith.constant dense<0.000000e+00> : vector<2x8x16xf32>
    %64 = tpu.matmul %63, %51, %cst_22 {dimension_numbers = #tpu.dot_dimension_numbers<[2], [1], [1], [2], [0, 0, 0, 1, 1, 2], [0], [0]>} : vector<2x8x8xf32>, vector<2x8x16xf32>, vector<2x8x16xf32> -> vector<2x8x16xf32>
    "tpu.trace_stop"() : () -> ()
    %c0_23 = arith.constant 0 : index
    %c0_24 = arith.constant 0 : index
    %c0_25 = arith.constant 0 : index
    %c0_26 = arith.constant 0 : index
    %65 = vector.load %arg5[%c0_23, %c0_24, %c0_25, %c0_26] : memref<2x2x16x32xf32, #tpu.memory_space<vmem>>, vector<1x2x16x32xf32>
    %66 = vector.shape_cast %65 : vector<1x2x16x32xf32> to vector<2x16x32xf32>
    %67 = vector.shape_cast %64 : vector<2x8x16xf32> to vector<16x16xf32>
    %68 = vector.extract_strided_slice %66 {offsets = [0, 0, 0], sizes = [1, 16, 32], strides = [1, 1, 1]} : vector<2x16x32xf32> to vector<1x16x32xf32>
    %69 = vector.shape_cast %68 : vector<1x16x32xf32> to vector<16x32xf32>
    %cst_27 = arith.constant dense<0.000000e+00> : vector<16x32xf32>
    %70 = tpu.matmul %67, %69, %cst_27 {dimension_numbers = #tpu.dot_dimension_numbers<[1], [0], [0], [1], [0, 0, 1, 1], [], []>} : vector<16x16xf32>, vector<16x32xf32>, vector<16x32xf32> -> vector<16x32xf32>
    %71 = vector.extract_strided_slice %46 {offsets = [0, 0, 16], sizes = [2, 8, 16], strides = [1, 1, 1]} : vector<2x8x32xf32> to vector<2x8x16xf32>
    %72 = vector.extract_strided_slice %47 {offsets = [0, 0, 16], sizes = [2, 8, 16], strides = [1, 1, 1]} : vector<2x8x32xf32> to vector<2x8x16xf32>
    %73 = vector.extract_strided_slice %48 {offsets = [0, 0, 16], sizes = [2, 8, 16], strides = [1, 1, 1]} : vector<2x8x32xf32> to vector<2x8x16xf32>
    "tpu.trace_start"() <{level = 10 : i32, message = "bqd,bkd->bqk"}> : () -> ()
    %cst_28 = arith.constant dense<0.000000e+00> : vector<2x8x8xf32>
    %74 = tpu.matmul %71, %72, %cst_28 {dimension_numbers = #tpu.dot_dimension_numbers<[2], [2], [1], [1], [0, 0, 0, 1, 1, 1], [0], [0]>} : vector<2x8x16xf32>, vector<2x8x16xf32>, vector<2x8x8xf32> -> vector<2x8x8xf32>
    "tpu.trace_stop"() : () -> ()
    %75 = arith.addf %74, %3 : vector<2x8x8xf32>
    %cst_29 = arith.constant dense<0xFF800000> : vector<2x8xf32>
    %76 = vector.multi_reduction <maximumf>, %75, %cst_29 [2] : vector<2x8x8xf32> to vector<2x8xf32>
    %77 = vector.shape_cast %76 : vector<2x8xf32> to vector<2x8x1xf32>
    %78 = vector.broadcast %77 : vector<2x8x1xf32> to vector<2x8x8xf32>
    %79 = arith.subf %75, %78 : vector<2x8x8xf32>
    %80 = math.exp %79 : vector<2x8x8xf32>
    %cst_30 = arith.constant dense<0.000000e+00> : vector<2x8xf32>
    %81 = vector.multi_reduction <add>, %80, %cst_30 [2] : vector<2x8x8xf32> to vector<2x8xf32>
    %82 = vector.shape_cast %81 : vector<2x8xf32> to vector<2x8x1xf32>
    %83 = tpu.reciprocal %82 {approx = true} : vector<2x8x1xf32> -> vector<2x8x1xf32>
    %84 = vector.broadcast %83 : vector<2x8x1xf32> to vector<2x8x8xf32>
    %85 = arith.mulf %80, %84 : vector<2x8x8xf32>
    "tpu.trace_start"() <{level = 10 : i32, message = "bqk,bkd->bqd"}> : () -> ()
    %cst_31 = arith.constant dense<0.000000e+00> : vector<2x8x16xf32>
    %86 = tpu.matmul %85, %73, %cst_31 {dimension_numbers = #tpu.dot_dimension_numbers<[2], [1], [1], [2], [0, 0, 0, 1, 1, 2], [0], [0]>} : vector<2x8x8xf32>, vector<2x8x16xf32>, vector<2x8x16xf32> -> vector<2x8x16xf32>
    "tpu.trace_stop"() : () -> ()
    %c0_32 = arith.constant 0 : index
    %c0_33 = arith.constant 0 : index
    %c0_34 = arith.constant 0 : index
    %c0_35 = arith.constant 0 : index
    %87 = vector.load %arg5[%c0_32, %c0_33, %c0_34, %c0_35] : memref<2x2x16x32xf32, #tpu.memory_space<vmem>>, vector<1x2x16x32xf32>
    %88 = vector.shape_cast %87 : vector<1x2x16x32xf32> to vector<2x16x32xf32>
    %89 = vector.shape_cast %86 : vector<2x8x16xf32> to vector<16x16xf32>
    %90 = vector.extract_strided_slice %88 {offsets = [1, 0, 0], sizes = [1, 16, 32], strides = [1, 1, 1]} : vector<2x16x32xf32> to vector<1x16x32xf32>
    %91 = vector.shape_cast %90 : vector<1x16x32xf32> to vector<16x32xf32>
    %cst_36 = arith.constant dense<0.000000e+00> : vector<16x32xf32>
    %92 = tpu.matmul %89, %91, %cst_36 {dimension_numbers = #tpu.dot_dimension_numbers<[1], [0], [0], [1], [0, 0, 1, 1], [], []>} : vector<16x16xf32>, vector<16x32xf32>, vector<16x32xf32> -> vector<16x32xf32>
    %93 = arith.addf %70, %92 : vector<16x32xf32>
    %94 = arith.addf %0, %93 : vector<16x32xf32>
    %cst_37 = arith.constant dense<0.000000e+00> : vector<16xf32>
    %95 = vector.multi_reduction <add>, %94, %cst_37 [1] : vector<16x32xf32> to vector<16xf32>
    %96 = vector.shape_cast %95 : vector<16xf32> to vector<16x1xf32>
    %cst_38 = arith.constant 3.200000e+01 : f32
    %97 = vector.broadcast %cst_38 : f32 to vector<16x1xf32>
    %98 = arith.divf %96, %97 : vector<16x1xf32>
    %99 = vector.broadcast %98 : vector<16x1xf32> to vector<16x32xf32>
    %100 = arith.subf %94, %99 : vector<16x32xf32>
    %101 = arith.mulf %100, %100 : vector<16x32xf32>
    %cst_39 = arith.constant dense<0.000000e+00> : vector<16xf32>
    %102 = vector.multi_reduction <add>, %101, %cst_39 [1] : vector<16x32xf32> to vector<16xf32>
    %103 = vector.shape_cast %102 : vector<16xf32> to vector<16x1xf32>
    %cst_40 = arith.constant 3.200000e+01 : f32
    %104 = vector.broadcast %cst_40 : f32 to vector<16x1xf32>
    %105 = arith.divf %103, %104 : vector<16x1xf32>
    %106 = vector.broadcast %98 : vector<16x1xf32> to vector<16x32xf32>
    %107 = arith.subf %94, %106 : vector<16x32xf32>
    %cst_41 = arith.constant 9.99999974E-6 : f32
    %108 = vector.broadcast %cst_41 : f32 to vector<16x1xf32>
    %109 = arith.addf %105, %108 : vector<16x1xf32>
    %110 = math.rsqrt %109 : vector<16x1xf32>
    %111 = vector.broadcast %110 : vector<16x1xf32> to vector<16x32xf32>
    %112 = arith.mulf %107, %111 : vector<16x32xf32>
    %113 = vector.broadcast %8 : vector<1x32xf32> to vector<16x32xf32>
    %114 = arith.mulf %112, %113 : vector<16x32xf32>
    %115 = vector.broadcast %9 : vector<1x32xf32> to vector<16x32xf32>
    %116 = arith.addf %114, %115 : vector<16x32xf32>
    %c0_42 = arith.constant 0 : index
    %c0_43 = arith.constant 0 : index
    %c0_44 = arith.constant 0 : index
    %117 = vector.load %arg6[%c0_42, %c0_43, %c0_44] : memref<2x32x64xf32, #tpu.memory_space<vmem>>, vector<1x32x64xf32>
    %118 = vector.shape_cast %117 : vector<1x32x64xf32> to vector<32x64xf32>
    %cst_45 = arith.constant dense<0.000000e+00> : vector<16x64xf32>
    %119 = tpu.matmul %116, %118, %cst_45 {dimension_numbers = #tpu.dot_dimension_numbers<[1], [0], [0], [1], [0, 0, 1, 1], [], []>} : vector<16x32xf32>, vector<32x64xf32>, vector<16x64xf32> -> vector<16x64xf32>
    %120 = arith.mulf %119, %119 : vector<16x64xf32>
    %121 = arith.mulf %119, %120 : vector<16x64xf32>
    %cst_46 = arith.constant 4.471500e-02 : f32
    %122 = vector.broadcast %cst_46 : f32 to vector<16x64xf32>
    %123 = arith.mulf %122, %121 : vector<16x64xf32>
    %124 = arith.addf %119, %123 : vector<16x64xf32>
    %cst_47 = arith.constant 0.797884583 : f32
    %125 = vector.broadcast %cst_47 : f32 to vector<16x64xf32>
    %126 = arith.mulf %125, %124 : vector<16x64xf32>
    %127 = math.tanh %126 : vector<16x64xf32>
    %cst_48 = arith.constant 1.000000e+00 : f32
    %128 = vector.broadcast %cst_48 : f32 to vector<16x64xf32>
    %129 = arith.addf %128, %127 : vector<16x64xf32>
    %cst_49 = arith.constant 5.000000e-01 : f32
    %130 = vector.broadcast %cst_49 : f32 to vector<16x64xf32>
    %131 = arith.mulf %130, %129 : vector<16x64xf32>
    %132 = arith.mulf %119, %131 : vector<16x64xf32>
    %c0_50 = arith.constant 0 : index
    %c0_51 = arith.constant 0 : index
    %c0_52 = arith.constant 0 : index
    %133 = vector.load %arg7[%c0_50, %c0_51, %c0_52] : memref<2x64x32xf32, #tpu.memory_space<vmem>>, vector<1x64x32xf32>
    %134 = vector.shape_cast %133 : vector<1x64x32xf32> to vector<64x32xf32>
    %cst_53 = arith.constant dense<0.000000e+00> : vector<16x32xf32>
    %135 = tpu.matmul %132, %134, %cst_53 {dimension_numbers = #tpu.dot_dimension_numbers<[1], [0], [0], [1], [0, 0, 1, 1], [], []>} : vector<16x64xf32>, vector<64x32xf32>, vector<16x32xf32> -> vector<16x32xf32>
    %136 = arith.addf %94, %135 : vector<16x32xf32>
    %c1 = arith.constant 1 : index
    %c0_54 = arith.constant 0 : index
    %c0_55 = arith.constant 0 : index
    %137 = vector.load %arg8[%c1, %c0_54, %c0_55] : memref<2x4x32xf32, #tpu.memory_space<vmem>>, vector<1x4x32xf32>
    %138 = vector.shape_cast %137 : vector<1x4x32xf32> to vector<4x32xf32>
    %139 = vector.extract_strided_slice %138 {offsets = [0, 0], sizes = [1, 32], strides = [1, 1]} : vector<4x32xf32> to vector<1x32xf32>
    %140 = vector.extract_strided_slice %138 {offsets = [1, 0], sizes = [1, 32], strides = [1, 1]} : vector<4x32xf32> to vector<1x32xf32>
    %141 = vector.extract_strided_slice %138 {offsets = [2, 0], sizes = [1, 32], strides = [1, 1]} : vector<4x32xf32> to vector<1x32xf32>
    %142 = vector.extract_strided_slice %138 {offsets = [3, 0], sizes = [1, 32], strides = [1, 1]} : vector<4x32xf32> to vector<1x32xf32>
    %cst_56 = arith.constant dense<0.000000e+00> : vector<16xf32>
    %143 = vector.multi_reduction <add>, %136, %cst_56 [1] : vector<16x32xf32> to vector<16xf32>
    %144 = vector.shape_cast %143 : vector<16xf32> to vector<16x1xf32>
    %cst_57 = arith.constant 3.200000e+01 : f32
    %145 = vector.broadcast %cst_57 : f32 to vector<16x1xf32>
    %146 = arith.divf %144, %145 : vector<16x1xf32>
    %147 = vector.broadcast %146 : vector<16x1xf32> to vector<16x32xf32>
    %148 = arith.subf %136, %147 : vector<16x32xf32>
    %149 = arith.mulf %148, %148 : vector<16x32xf32>
    %cst_58 = arith.constant dense<0.000000e+00> : vector<16xf32>
    %150 = vector.multi_reduction <add>, %149, %cst_58 [1] : vector<16x32xf32> to vector<16xf32>
    %151 = vector.shape_cast %150 : vector<16xf32> to vector<16x1xf32>
    %cst_59 = arith.constant 3.200000e+01 : f32
    %152 = vector.broadcast %cst_59 : f32 to vector<16x1xf32>
    %153 = arith.divf %151, %152 : vector<16x1xf32>
    %154 = vector.broadcast %146 : vector<16x1xf32> to vector<16x32xf32>
    %155 = arith.subf %136, %154 : vector<16x32xf32>
    %cst_60 = arith.constant 9.99999974E-6 : f32
    %156 = vector.broadcast %cst_60 : f32 to vector<16x1xf32>
    %157 = arith.addf %153, %156 : vector<16x1xf32>
    %158 = math.rsqrt %157 : vector<16x1xf32>
    %159 = vector.broadcast %158 : vector<16x1xf32> to vector<16x32xf32>
    %160 = arith.mulf %155, %159 : vector<16x32xf32>
    %161 = vector.broadcast %139 : vector<1x32xf32> to vector<16x32xf32>
    %162 = arith.mulf %160, %161 : vector<16x32xf32>
    %163 = vector.broadcast %140 : vector<1x32xf32> to vector<16x32xf32>
    %164 = arith.addf %162, %163 : vector<16x32xf32>
    %c1_61 = arith.constant 1 : index
    %c0_62 = arith.constant 0 : index
    %c0_63 = arith.constant 0 : index
    %165 = vector.load %arg4[%c1_61, %c0_62, %c0_63] : memref<2x32x160xf32, #tpu.memory_space<vmem>>, vector<1x32x160xf32>
    %166 = vector.shape_cast %165 : vector<1x32x160xf32> to vector<32x160xf32>
    %cst_64 = arith.constant dense<0.000000e+00> : vector<16x160xf32>
    %167 = tpu.matmul %164, %166, %cst_64 {dimension_numbers = #tpu.dot_dimension_numbers<[1], [0], [0], [1], [0, 0, 1, 1], [], []>} : vector<16x32xf32>, vector<32x160xf32>, vector<16x160xf32> -> vector<16x160xf32>
    %168 = vector.extract_strided_slice %167 {offsets = [0, 0], sizes = [16, 32], strides = [1, 1]} : vector<16x160xf32> to vector<16x32xf32>
    %169 = arith.mulf %168, %1 : vector<16x32xf32>
    %170 = vector.extract_strided_slice %167 {offsets = [0, 32], sizes = [16, 32], strides = [1, 1]} : vector<16x160xf32> to vector<16x32xf32>
    %171 = arith.mulf %170, %2 : vector<16x32xf32>
    %172 = arith.addf %169, %171 : vector<16x32xf32>
    %173 = vector.extract_strided_slice %167 {offsets = [0, 64], sizes = [16, 32], strides = [1, 1]} : vector<16x160xf32> to vector<16x32xf32>
    %174 = arith.mulf %173, %1 : vector<16x32xf32>
    %175 = vector.extract_strided_slice %167 {offsets = [0, 96], sizes = [16, 32], strides = [1, 1]} : vector<16x160xf32> to vector<16x32xf32>
    %176 = arith.mulf %175, %2 : vector<16x32xf32>
    %177 = arith.addf %174, %176 : vector<16x32xf32>
    %178 = vector.extract_strided_slice %167 {offsets = [0, 128], sizes = [16, 32], strides = [1, 1]} : vector<16x160xf32> to vector<16x32xf32>
    %179 = vector.shape_cast %172 : vector<16x32xf32> to vector<2x8x32xf32>
    %180 = vector.shape_cast %177 : vector<16x32xf32> to vector<2x8x32xf32>
    %181 = vector.shape_cast %178 : vector<16x32xf32> to vector<2x8x32xf32>
    %182 = vector.extract_strided_slice %179 {offsets = [0, 0, 0], sizes = [2, 8, 16], strides = [1, 1, 1]} : vector<2x8x32xf32> to vector<2x8x16xf32>
    %183 = vector.extract_strided_slice %180 {offsets = [0, 0, 0], sizes = [2, 8, 16], strides = [1, 1, 1]} : vector<2x8x32xf32> to vector<2x8x16xf32>
    %184 = vector.extract_strided_slice %181 {offsets = [0, 0, 0], sizes = [2, 8, 16], strides = [1, 1, 1]} : vector<2x8x32xf32> to vector<2x8x16xf32>
    "tpu.trace_start"() <{level = 10 : i32, message = "bqd,bkd->bqk"}> : () -> ()
    %cst_65 = arith.constant dense<0.000000e+00> : vector<2x8x8xf32>
    %185 = tpu.matmul %182, %183, %cst_65 {dimension_numbers = #tpu.dot_dimension_numbers<[2], [2], [1], [1], [0, 0, 0, 1, 1, 1], [0], [0]>} : vector<2x8x16xf32>, vector<2x8x16xf32>, vector<2x8x8xf32> -> vector<2x8x8xf32>
    "tpu.trace_stop"() : () -> ()
    %186 = arith.addf %185, %3 : vector<2x8x8xf32>
    %cst_66 = arith.constant dense<0xFF800000> : vector<2x8xf32>
    %187 = vector.multi_reduction <maximumf>, %186, %cst_66 [2] : vector<2x8x8xf32> to vector<2x8xf32>
    %188 = vector.shape_cast %187 : vector<2x8xf32> to vector<2x8x1xf32>
    %189 = vector.broadcast %188 : vector<2x8x1xf32> to vector<2x8x8xf32>
    %190 = arith.subf %186, %189 : vector<2x8x8xf32>
    %191 = math.exp %190 : vector<2x8x8xf32>
    %cst_67 = arith.constant dense<0.000000e+00> : vector<2x8xf32>
    %192 = vector.multi_reduction <add>, %191, %cst_67 [2] : vector<2x8x8xf32> to vector<2x8xf32>
    %193 = vector.shape_cast %192 : vector<2x8xf32> to vector<2x8x1xf32>
    %194 = tpu.reciprocal %193 {approx = true} : vector<2x8x1xf32> -> vector<2x8x1xf32>
    %195 = vector.broadcast %194 : vector<2x8x1xf32> to vector<2x8x8xf32>
    %196 = arith.mulf %191, %195 : vector<2x8x8xf32>
    "tpu.trace_start"() <{level = 10 : i32, message = "bqk,bkd->bqd"}> : () -> ()
    %cst_68 = arith.constant dense<0.000000e+00> : vector<2x8x16xf32>
    %197 = tpu.matmul %196, %184, %cst_68 {dimension_numbers = #tpu.dot_dimension_numbers<[2], [1], [1], [2], [0, 0, 0, 1, 1, 2], [0], [0]>} : vector<2x8x8xf32>, vector<2x8x16xf32>, vector<2x8x16xf32> -> vector<2x8x16xf32>
    "tpu.trace_stop"() : () -> ()
    %c1_69 = arith.constant 1 : index
    %c0_70 = arith.constant 0 : index
    %c0_71 = arith.constant 0 : index
    %c0_72 = arith.constant 0 : index
    %198 = vector.load %arg5[%c1_69, %c0_70, %c0_71, %c0_72] : memref<2x2x16x32xf32, #tpu.memory_space<vmem>>, vector<1x2x16x32xf32>
    %199 = vector.shape_cast %198 : vector<1x2x16x32xf32> to vector<2x16x32xf32>
    %200 = vector.shape_cast %197 : vector<2x8x16xf32> to vector<16x16xf32>
    %201 = vector.extract_strided_slice %199 {offsets = [0, 0, 0], sizes = [1, 16, 32], strides = [1, 1, 1]} : vector<2x16x32xf32> to vector<1x16x32xf32>
    %202 = vector.shape_cast %201 : vector<1x16x32xf32> to vector<16x32xf32>
    %cst_73 = arith.constant dense<0.000000e+00> : vector<16x32xf32>
    %203 = tpu.matmul %200, %202, %cst_73 {dimension_numbers = #tpu.dot_dimension_numbers<[1], [0], [0], [1], [0, 0, 1, 1], [], []>} : vector<16x16xf32>, vector<16x32xf32>, vector<16x32xf32> -> vector<16x32xf32>
    %204 = vector.extract_strided_slice %179 {offsets = [0, 0, 16], sizes = [2, 8, 16], strides = [1, 1, 1]} : vector<2x8x32xf32> to vector<2x8x16xf32>
    %205 = vector.extract_strided_slice %180 {offsets = [0, 0, 16], sizes = [2, 8, 16], strides = [1, 1, 1]} : vector<2x8x32xf32> to vector<2x8x16xf32>
    %206 = vector.extract_strided_slice %181 {offsets = [0, 0, 16], sizes = [2, 8, 16], strides = [1, 1, 1]} : vector<2x8x32xf32> to vector<2x8x16xf32>
    "tpu.trace_start"() <{level = 10 : i32, message = "bqd,bkd->bqk"}> : () -> ()
    %cst_74 = arith.constant dense<0.000000e+00> : vector<2x8x8xf32>
    %207 = tpu.matmul %204, %205, %cst_74 {dimension_numbers = #tpu.dot_dimension_numbers<[2], [2], [1], [1], [0, 0, 0, 1, 1, 1], [0], [0]>} : vector<2x8x16xf32>, vector<2x8x16xf32>, vector<2x8x8xf32> -> vector<2x8x8xf32>
    "tpu.trace_stop"() : () -> ()
    %208 = arith.addf %207, %3 : vector<2x8x8xf32>
    %cst_75 = arith.constant dense<0xFF800000> : vector<2x8xf32>
    %209 = vector.multi_reduction <maximumf>, %208, %cst_75 [2] : vector<2x8x8xf32> to vector<2x8xf32>
    %210 = vector.shape_cast %209 : vector<2x8xf32> to vector<2x8x1xf32>
    %211 = vector.broadcast %210 : vector<2x8x1xf32> to vector<2x8x8xf32>
    %212 = arith.subf %208, %211 : vector<2x8x8xf32>
    %213 = math.exp %212 : vector<2x8x8xf32>
    %cst_76 = arith.constant dense<0.000000e+00> : vector<2x8xf32>
    %214 = vector.multi_reduction <add>, %213, %cst_76 [2] : vector<2x8x8xf32> to vector<2x8xf32>
    %215 = vector.shape_cast %214 : vector<2x8xf32> to vector<2x8x1xf32>
    %216 = tpu.reciprocal %215 {approx = true} : vector<2x8x1xf32> -> vector<2x8x1xf32>
    %217 = vector.broadcast %216 : vector<2x8x1xf32> to vector<2x8x8xf32>
    %218 = arith.mulf %213, %217 : vector<2x8x8xf32>
    "tpu.trace_start"() <{level = 10 : i32, message = "bqk,bkd->bqd"}> : () -> ()
    %cst_77 = arith.constant dense<0.000000e+00> : vector<2x8x16xf32>
    %219 = tpu.matmul %218, %206, %cst_77 {dimension_numbers = #tpu.dot_dimension_numbers<[2], [1], [1], [2], [0, 0, 0, 1, 1, 2], [0], [0]>} : vector<2x8x8xf32>, vector<2x8x16xf32>, vector<2x8x16xf32> -> vector<2x8x16xf32>
    "tpu.trace_stop"() : () -> ()
    %c1_78 = arith.constant 1 : index
    %c0_79 = arith.constant 0 : index
    %c0_80 = arith.constant 0 : index
    %c0_81 = arith.constant 0 : index
    %220 = vector.load %arg5[%c1_78, %c0_79, %c0_80, %c0_81] : memref<2x2x16x32xf32, #tpu.memory_space<vmem>>, vector<1x2x16x32xf32>
    %221 = vector.shape_cast %220 : vector<1x2x16x32xf32> to vector<2x16x32xf32>
    %222 = vector.shape_cast %219 : vector<2x8x16xf32> to vector<16x16xf32>
    %223 = vector.extract_strided_slice %221 {offsets = [1, 0, 0], sizes = [1, 16, 32], strides = [1, 1, 1]} : vector<2x16x32xf32> to vector<1x16x32xf32>
    %224 = vector.shape_cast %223 : vector<1x16x32xf32> to vector<16x32xf32>
    %cst_82 = arith.constant dense<0.000000e+00> : vector<16x32xf32>
    %225 = tpu.matmul %222, %224, %cst_82 {dimension_numbers = #tpu.dot_dimension_numbers<[1], [0], [0], [1], [0, 0, 1, 1], [], []>} : vector<16x16xf32>, vector<16x32xf32>, vector<16x32xf32> -> vector<16x32xf32>
    %226 = arith.addf %203, %225 : vector<16x32xf32>
    %227 = arith.addf %136, %226 : vector<16x32xf32>
    %cst_83 = arith.constant dense<0.000000e+00> : vector<16xf32>
    %228 = vector.multi_reduction <add>, %227, %cst_83 [1] : vector<16x32xf32> to vector<16xf32>
    %229 = vector.shape_cast %228 : vector<16xf32> to vector<16x1xf32>
    %cst_84 = arith.constant 3.200000e+01 : f32
    %230 = vector.broadcast %cst_84 : f32 to vector<16x1xf32>
    %231 = arith.divf %229, %230 : vector<16x1xf32>
    %232 = vector.broadcast %231 : vector<16x1xf32> to vector<16x32xf32>
    %233 = arith.subf %227, %232 : vector<16x32xf32>
    %234 = arith.mulf %233, %233 : vector<16x32xf32>
    %cst_85 = arith.constant dense<0.000000e+00> : vector<16xf32>
    %235 = vector.multi_reduction <add>, %234, %cst_85 [1] : vector<16x32xf32> to vector<16xf32>
    %236 = vector.shape_cast %235 : vector<16xf32> to vector<16x1xf32>
    %cst_86 = arith.constant 3.200000e+01 : f32
    %237 = vector.broadcast %cst_86 : f32 to vector<16x1xf32>
    %238 = arith.divf %236, %237 : vector<16x1xf32>
    %239 = vector.broadcast %231 : vector<16x1xf32> to vector<16x32xf32>
    %240 = arith.subf %227, %239 : vector<16x32xf32>
    %cst_87 = arith.constant 9.99999974E-6 : f32
    %241 = vector.broadcast %cst_87 : f32 to vector<16x1xf32>
    %242 = arith.addf %238, %241 : vector<16x1xf32>
    %243 = math.rsqrt %242 : vector<16x1xf32>
    %244 = vector.broadcast %243 : vector<16x1xf32> to vector<16x32xf32>
    %245 = arith.mulf %240, %244 : vector<16x32xf32>
    %246 = vector.broadcast %141 : vector<1x32xf32> to vector<16x32xf32>
    %247 = arith.mulf %245, %246 : vector<16x32xf32>
    %248 = vector.broadcast %142 : vector<1x32xf32> to vector<16x32xf32>
    %249 = arith.addf %247, %248 : vector<16x32xf32>
    %c1_88 = arith.constant 1 : index
    %c0_89 = arith.constant 0 : index
    %c0_90 = arith.constant 0 : index
    %250 = vector.load %arg6[%c1_88, %c0_89, %c0_90] : memref<2x32x64xf32, #tpu.memory_space<vmem>>, vector<1x32x64xf32>
    %251 = vector.shape_cast %250 : vector<1x32x64xf32> to vector<32x64xf32>
    %cst_91 = arith.constant dense<0.000000e+00> : vector<16x64xf32>
    %252 = tpu.matmul %249, %251, %cst_91 {dimension_numbers = #tpu.dot_dimension_numbers<[1], [0], [0], [1], [0, 0, 1, 1], [], []>} : vector<16x32xf32>, vector<32x64xf32>, vector<16x64xf32> -> vector<16x64xf32>
    %253 = arith.mulf %252, %252 : vector<16x64xf32>
    %254 = arith.mulf %252, %253 : vector<16x64xf32>
    %cst_92 = arith.constant 4.471500e-02 : f32
    %255 = vector.broadcast %cst_92 : f32 to vector<16x64xf32>
    %256 = arith.mulf %255, %254 : vector<16x64xf32>
    %257 = arith.addf %252, %256 : vector<16x64xf32>
    %cst_93 = arith.constant 0.797884583 : f32
    %258 = vector.broadcast %cst_93 : f32 to vector<16x64xf32>
    %259 = arith.mulf %258, %257 : vector<16x64xf32>
    %260 = math.tanh %259 : vector<16x64xf32>
    %cst_94 = arith.constant 1.000000e+00 : f32
    %261 = vector.broadcast %cst_94 : f32 to vector<16x64xf32>
    %262 = arith.addf %261, %260 : vector<16x64xf32>
    %cst_95 = arith.constant 5.000000e-01 : f32
    %263 = vector.broadcast %cst_95 : f32 to vector<16x64xf32>
    %264 = arith.mulf %263, %262 : vector<16x64xf32>
    %265 = arith.mulf %252, %264 : vector<16x64xf32>
    %c1_96 = arith.constant 1 : index
    %c0_97 = arith.constant 0 : index
    %c0_98 = arith.constant 0 : index
    %266 = vector.load %arg7[%c1_96, %c0_97, %c0_98] : memref<2x64x32xf32, #tpu.memory_space<vmem>>, vector<1x64x32xf32>
    %267 = vector.shape_cast %266 : vector<1x64x32xf32> to vector<64x32xf32>
    %cst_99 = arith.constant dense<0.000000e+00> : vector<16x32xf32>
    %268 = tpu.matmul %265, %267, %cst_99 {dimension_numbers = #tpu.dot_dimension_numbers<[1], [0], [0], [1], [0, 0, 1, 1], [], []>} : vector<16x64xf32>, vector<64x32xf32>, vector<16x32xf32> -> vector<16x32xf32>
    %269 = arith.addf %227, %268 : vector<16x32xf32>
    %c0_100 = arith.constant 0 : index
    %c0_101 = arith.constant 0 : index
    %270 = vector.load %arg9[%c0_100, %c0_101] : memref<16x32xf32, #tpu.memory_space<vmem>>, vector<16x32xf32>
    tpu.vector_store %arg9[%c0_100, %c0_101], %269 {strides = array<i32>} : memref<16x32xf32, #tpu.memory_space<vmem>>, vector<16x32xf32>,
    return
  }
}

</mosaic_0001>

<llo_original>
// kernel: tpu_custom_call.1
$region0: #{tpu_custom_call.1}
  #allocation0 [shape = 'u32[]', space=smem, size = 0x4, offset = 0x4, fixed_abs, tag = 'smem constant byte address 0x4 - core index']
  #allocation1 [shape = 'u32[72,128]{1,0:T(1,128)}', space=vmem, size = 0x9000, scoped, tag = 'internal scratch']
  %s0 = inlined_call_operand.hbm [shape: f32[16,32], index: 0, kind: input, shape index: {}]
  %s1 = inlined_call_operand.hbm [shape: f32[2,8,8], index: 1, kind: input, shape index: {}]
  %s2 = inlined_call_operand.hbm [shape: f32[16,32], index: 2, kind: input, shape index: {}]
  %s3 = inlined_call_operand.hbm [shape: f32[16,32], index: 3, kind: input, shape index: {}]
  %s4 = inlined_call_operand.vmem [shape: f32[2,32,160], index: 4, kind: input, shape index: {}]
  %s5 = inlined_call_operand.vmem [shape: f32[2,2,16,32], index: 5, kind: input, shape index: {}]
  %s6 = inlined_call_operand.hbm [shape: f32[2,32,64], index: 6, kind: input, shape index: {}]
  %s7 = inlined_call_operand.vmem [shape: f32[2,64,32], index: 7, kind: input, shape index: {}]
  %s8 = inlined_call_operand.hbm [shape: f32[2,4,32], index: 8, kind: input, shape index: {}]
  %s9 = inlined_call_operand.hbm [shape: f32[16,32], index: 9, kind: output, shape index: {}]
  %s10 = sld [smem:[#allocation0]]
  $region70: #{tpu_custom_call.1} parent=0
    _
  %s12 = ssub.s32 1, %s10
  %s13 = scalar_select 0, %s12, %s10
  $region1: #{tpu_custom_call.1} parent=0
    #allocation2 [shape = 'u8[8192]{0}', space=vmem, size = 0x2000, scoped, tag = 'input window, operand 0, single buffered']
    #allocation3 [shape = 's32[1]{0}', space=sflag, size = 0x4, scoped, tag = 'scoped memory for tpu_custom_call.1']
    #allocation4 [shape = 's32[1]{0}', space=sflag, size = 0x4, scoped, tag = 'scoped memory for tpu_custom_call.1']
    #allocation5 [shape = 'u8[8192]{0}', space=vmem, size = 0x2000, scoped, tag = 'input window, operand 1, single buffered']
    #allocation6 [shape = 's32[1]{0}', space=sflag, size = 0x4, scoped, tag = 'scoped memory for tpu_custom_call.1']
    #allocation7 [shape = 'u8[8192]{0}', space=vmem, size = 0x2000, scoped, tag = 'input window, operand 2, single buffered']
    #allocation8 [shape = 'u8[8192]{0}', space=vmem, size = 0x2000, scoped, tag = 'input window, operand 3, single buffered']
    #allocation9 [shape = 's32[1]{0}', space=sflag, size = 0x4, scoped, tag = 'scoped memory for tpu_custom_call.1']
    #allocation10 [shape = 'u8[32768]{0}', space=vmem, size = 0x8000, scoped, tag = 'input window, operand 6, single buffered']
    #allocation11 [shape = 'u8[4096]{0}', space=vmem, size = 0x1000, scoped, tag = 'input window, operand 8, single buffered']
    #allocation12 [shape = 's32[1]{0}', space=sflag, size = 0x4, scoped, tag = 'scoped memory for tpu_custom_call.1']
    #allocation13 [shape = 'u8[8192]{0}', space=vmem, size = 0x2000, scoped, tag = 'output window, operand 0, single buffered']
    %14 = vsyncpa [#allocation3], 0
    %15 = vsyncpa [#allocation6], 0
    %16 = vsyncpa [#allocation9], 0
    %17 = vsyncpa [#allocation12], 0
    %18 = vsyncpa [#allocation4], 0
    // Predicated region
    $region2: #{tpu_custom_call.1} parent=1 // pred_check
      _
    $region3: #{tpu_custom_call.1} parent=1 // pred_check_branch
      %20 = sbr.rel (0) target = $region5
    $region4: #{tpu_custom_call.1} parent=1 // pred_region
      %22 = vsyncadd [#allocation3], 0
      %s23 = sshll.u32 %s0, 4
      %s24 = int_to_ptr.hbm [resolvable:$true] %s23
      %s25 = sshll.u32 [#allocation2], 4
      %s26 = int_to_ptr.vmem [resolvable:$true] %s25
      %31 = dma.hbm_to_vmem [thread:$0]  %s24, 256, %s26, [#allocation3], 128, 128, 8
    $region5: #{tpu_custom_call.1} parent=1 // pred_fallthru
      _
    // Predicated region
    $region6: #{tpu_custom_call.1} parent=1 // pred_check
      _
    $region7: #{tpu_custom_call.1} parent=1 // pred_check_branch
      %33 = sbr.rel (0) target = $region9
    $region8: #{tpu_custom_call.1} parent=1 // pred_region
      %35 = vsyncadd [#allocation6], 0
      %s36 = sshll.u32 %s1, 4
      %s37 = int_to_ptr.hbm [resolvable:$true] %s36
      %s38 = sshll.u32 [#allocation5], 4
      %s39 = int_to_ptr.vmem [resolvable:$true] %s38
      %44 = dma.hbm_to_vmem [thread:$0]  %s37, 256, %s39, [#allocation6], 128, 128, 8
    $region9: #{tpu_custom_call.1} parent=1 // pred_fallthru
      _
    // Predicated region
    $region10: #{tpu_custom_call.1} parent=1 // pred_check
      _
    $region11: #{tpu_custom_call.1} parent=1 // pred_check_branch
      %46 = sbr.rel (0) target = $region13
    $region12: #{tpu_custom_call.1} parent=1 // pred_region
      %48 = vsyncadd [#allocation6], 0
      %s49 = sshll.u32 %s2, 4
      %s50 = int_to_ptr.hbm [resolvable:$true] %s49
      %s51 = sshll.u32 [#allocation7], 4
      %s52 = int_to_ptr.vmem [resolvable:$true] %s51
      %57 = dma.hbm_to_vmem [thread:$0]  %s50, 256, %s52, [#allocation6], 128, 128, 8
    $region13: #{tpu_custom_call.1} parent=1 // pred_fallthru
      _
    // Predicated region
    $region14: #{tpu_custom_call.1} parent=1 // pred_check
      _
    $region15: #{tpu_custom_call.1} parent=1 // pred_check_branch
      %59 = sbr.rel (0) target = $region17
    $region16: #{tpu_custom_call.1} parent=1 // pred_region
      %61 = vsyncadd [#allocation9], 0
      %s62 = sshll.u32 %s3, 4
      %s63 = int_to_ptr.hbm [resolvable:$true] %s62
      %s64 = sshll.u32 [#allocation8], 4
      %s65 = int_to_ptr.vmem [resolvable:$true] %s64
      %70 = dma.hbm_to_vmem [thread:$0]  %s63, 256, %s65, [#allocation9], 128, 128, 8
    $region17: #{tpu_custom_call.1} parent=1 // pred_fallthru
      _
    // Predicated region
    $region18: #{tpu_custom_call.1} parent=1 // pred_check
      _
    $region19: #{tpu_custom_call.1} parent=1 // pred_check_branch
      %72 = sbr.rel (0) target = $region21
    $region20: #{tpu_custom_call.1} parent=1 // pred_region
      _
    $region21: #{tpu_custom_call.1} parent=1 // pred_fallthru
      _
    // Predicated region
    $region22: #{tpu_custom_call.1} parent=1 // pred_check
      _
    $region23: #{tpu_custom_call.1} parent=1 // pred_check_branch
      %74 = sbr.rel (0) target = $region25
    $region24: #{tpu_custom_call.1} parent=1 // pred_region
      _
    $region25: #{tpu_custom_call.1} parent=1 // pred_fallthru
      _
    // Predicated region
    $region26: #{tpu_custom_call.1} parent=1 // pred_check
      _
    $region27: #{tpu_custom_call.1} parent=1 // pred_check_branch
      %76 = sbr.rel (0) target = $region29
    $region28: #{tpu_custom_call.1} parent=1 // pred_region
      %78 = vsyncadd [#allocation9], 0
      %s79 = sshll.u32 %s6, 4
      %s80 = int_to_ptr.hbm [resolvable:$true] %s79
      %s81 = sshll.u32 [#allocation10], 4
      %s82 = int_to_ptr.vmem [resolvable:$true] %s81
      %87 = dma.hbm_to_vmem [thread:$0]  %s80, 1024, %s82, [#allocation9], 128, 128, 8
    $region29: #{tpu_custom_call.1} parent=1 // pred_fallthru
      _
    // Predicated region
    $region30: #{tpu_custom_call.1} parent=1 // pred_check
      _
    $region31: #{tpu_custom_call.1} parent=1 // pred_check_branch
      %89 = sbr.rel (0) target = $region33
    $region32: #{tpu_custom_call.1} parent=1 // pred_region
      _
    $region33: #{tpu_custom_call.1} parent=1 // pred_fallthru
      _
    // Predicated region
    $region34: #{tpu_custom_call.1} parent=1 // pred_check
      _
    $region35: #{tpu_custom_call.1} parent=1 // pred_check_branch
      %91 = sbr.rel (0) target = $region37
    $region36: #{tpu_custom_call.1} parent=1 // pred_region
      %93 = vsyncadd [#allocation12], 0
      %s94 = sshll.u32 %s8, 4
      %s95 = int_to_ptr.hbm [resolvable:$true] %s94
      %s96 = sshll.u32 [#allocation11], 4
      %s97 = int_to_ptr.vmem [resolvable:$true] %s96
      %102 = dma.hbm_to_vmem [thread:$0]  %s95, 128, %s97, [#allocation12], 64, 64, 4
    $region37: #{tpu_custom_call.1} parent=1 // pred_fallthru
      _
    // Predicated region
    $region38: #{tpu_custom_call.1} parent=1 // pred_check
      _
    $region39: #{tpu_custom_call.1} parent=1 // pred_check_branch
      %104 = sbr.rel (0) target = $region41
    $region40: #{tpu_custom_call.1} parent=1 // pred_region
      %106 = dma.done [#allocation3], 256
    $region41: #{tpu_custom_call.1} parent=1 // pred_fallthru
      _
    // Predicated region
    $region42: #{tpu_custom_call.1} parent=1 // pred_check
      _
    $region43: #{tpu_custom_call.1} parent=1 // pred_check_branch
      %108 = sbr.rel (0) target = $region45
    $region44: #{tpu_custom_call.1} parent=1 // pred_region
      %110 = dma.done [#allocation6], 256
    $region45: #{tpu_custom_call.1} parent=1 // pred_fallthru
      _
    // Predicated region
    $region46: #{tpu_custom_call.1} parent=1 // pred_check
      _
    $region47: #{tpu_custom_call.1} parent=1 // pred_check_branch
      %112 = sbr.rel (0) target = $region49
    $region48: #{tpu_custom_call.1} parent=1 // pred_region
      %114 = dma.done [#allocation6], 256
    $region49: #{tpu_custom_call.1} parent=1 // pred_fallthru
      _
    // Predicated region
    $region50: #{tpu_custom_call.1} parent=1 // pred_check
      _
    $region51: #{tpu_custom_call.1} parent=1 // pred_check_branch
      %116 = sbr.rel (0) target = $region53
    $region52: #{tpu_custom_call.1} parent=1 // pred_region
      %118 = dma.done [#allocation9], 256
    $region53: #{tpu_custom_call.1} parent=1 // pred_fallthru
      _
    // Predicated region
    $region54: #{tpu_custom_call.1} parent=1 // pred_check
      _
    $region55: #{tpu_custom_call.1} parent=1 // pred_check_branch
      %120 = sbr.rel (0) target = $region57
    $region56: #{tpu_custom_call.1} parent=1 // pred_region
      %122 = dma.done [#allocation9], 1024
    $region57: #{tpu_custom_call.1} parent=1 // pred_fallthru
      _
    // Predicated region
    $region58: #{tpu_custom_call.1} parent=1 // pred_check
      _
    $region59: #{tpu_custom_call.1} parent=1 // pred_check_branch
      %124 = sbr.rel (0) target = $region61
    $region60: #{tpu_custom_call.1} parent=1 // pred_region
      %126 = dma.done [#allocation12], 128
    $region61: #{tpu_custom_call.1} parent=1 // pred_fallthru
      _
    %v127 = vld [vmem:[#allocation2] sm:$0xff]
    %v128 = vld [vmem:[#allocation2 + $0x8] sm:$0xff]
    %v129 = vld [vmem:[#allocation7] sm:$0xff]
    %v130 = vld [vmem:[#allocation7 + $0x8] sm:$0xff]
    %v131 = vld [vmem:[#allocation8] sm:$0xff]
    %v132 = vld [vmem:[#allocation8 + $0x8] sm:$0xff]
    %v133 = vld [vmem:[#allocation5] sm:$0xff]
    %v134 = vld [vmem:[#allocation5 + $0x8] sm:$0xff]
    %v135 = vld [vmem:[#allocation11] sm:$0xf]
    %vm136 = vcmask 261120
    %v137 = vsel %vm136, %v127, 0.0
    %138 = vadd.xlane.f32.xlu0 %v137
    %v139 = vpop.xlane.xlu0 %138
    %v140 = vsel %vm136, %v128, 0.0
    %141 = vadd.xlane.f32.xlu0 %v140
    %v142 = vpop.xlane.xlu0 %141
    %v143 = vrcp.pop 32.0
    %v144 = vmul.f32 32.0, %v143
    %v145 = vsub.f32 1.0, %v144
    %v146 = vmul.f32 %v143, %v145
    %v147 = vadd.f32 %v143, %v146
    %vm148 = vweird.f32 %v143
    %v149 = vsel %vm148, %v143, %v147
    %v150 = vmul.f32 %v139, %v149
    %v151 = vmul.f32 %v142, %v149
    %v152 = vsub.f32 %v127, %v150
    %v153 = vsub.f32 %v128, %v151
    %v154 = vmul.f32 %v152, %v152
    %v155 = vmul.f32 %v153, %v153
    %v156 = vsel %vm136, %v154, 0.0
    %157 = vadd.xlane.f32.xlu0 %v156
    %v158 = vpop.xlane.xlu0 %157
    %v159 = vsel %vm136, %v155, 0.0
    %160 = vadd.xlane.f32.xlu0 %v159
    %v161 = vpop.xlane.xlu0 %160
    %v162 = vmul.f32 %v158, %v149
    %v163 = vmul.f32 %v161, %v149
    %v164 = vadd.f32 %v162, 1e-05
    %v165 = vadd.f32 %v163, 1e-05
    %v166 = vrsqrt.pop %v164
    %v167 = vmul.f32 %v166, %v164
    %v168 = vmul.f32 %v167, %v166
    %v169 = vmul.f32 0.5, %v168
    %v170 = vsub.f32 1.5, %v169
    %v171 = vmul.f32 %v166, %v170
    %vm172 = vweird.f32 %v164
    %vm173 = vweird.f32 %v166
    %vm174 = vmor %vm172, %vm173
    %v175 = vsel %vm174, %v166, %v171
    %v176 = vrsqrt.pop %v165
    %v177 = vmul.f32 %v176, %v165
    %v178 = vmul.f32 %v177, %v176
    %v179 = vmul.f32 0.5, %v178
    %v180 = vsub.f32 1.5, %v179
    %v181 = vmul.f32 %v176, %v180
    %vm182 = vweird.f32 %v165
    %vm183 = vweird.f32 %v176
    %vm184 = vmor %vm182, %vm183
    %v185 = vsel %vm184, %v176, %v181
    %v186 = vmul.f32 %v152, %v175
    %v187 = vmul.f32 %v153, %v185
    %v188 = vperm.slane %v135, 0
    %v189 = vmul.f32 %v186, %v188
    %v190 = vmul.f32 %v187, %v188
    %v191 = vperm.slane %v135, 1
    %v192 = vadd.f32 %v189, %v191
    %v193 = vadd.f32 %v190, %v191
    %v194 = vld [vmem:[%s4] sm:$0xff]
    %v195 = vld [vmem:[%s4 + $0x8] sm:$0xff]
    %v196 = vld [vmem:[%s4 + $0x10] sm:$0xff]
    %v197 = vld [vmem:[%s4 + $0x18] sm:$0xff]
    %v198 = vld [vmem:[%s4 + $0x20] sm:$0xff]
    %v199 = vld [vmem:[%s4 + $0x28] sm:$0xff]
    %v200 = vld [vmem:[%s4 + $0x30] sm:$0xff]
    %v201 = vld [vmem:[%s4 + $0x38] sm:$0xff]
    %v203 = vsel %vm136, %v192, 0
    %v206 = vsel %vm136, %v193, 0
    %208 = vmatpush.msra.mxu0 0.0
    %209 = vmatpush.msra.mxu0 0.0
    %210 = vmatpush.msra.mxu0 0.0
    %211 = vmatpush.msra.mxu0 0.0
    %212 = vmatpush.msra.mxu0 0.0
    %213 = vmatpush.msra.mxu0 0.0
    %214 = vmatpush.msra.mxu0 0.0
    %215 = vmatpush.msra.mxu0 0.0
    %216 = vmatpush.msra.mxu0 0.0
    %217 = vmatpush.msra.mxu0 0.0
    %218 = vmatpush.msra.mxu0 0.0
    %219 = vmatpush.msra.mxu0 0.0
    %220 = vmatpush.msra.mxu0 %v200
    %221 = vmatpush.msra.mxu0 %v198
    %222 = vmatpush.msra.mxu0 %v196
    %223 = vmatpush.msra.mxu0 %v194
    %224 = vmatmul.f32.gmra.mxu0 %v203
    %v225 = vpop.f32.mrf.mxu0
    %v226 = vadd.f32 0.0, %v225
    %227 = vmatmul.f32.gmra.mxu0 %v206
    %v228 = vpop.f32.mrf.mxu0
    %v229 = vadd.f32 0.0, %v228
    %230 = vdwg.mxu0
    %231 = vmatpush.msra.mxu0 0.0
    %232 = vmatpush.msra.mxu0 0.0
    %233 = vmatpush.msra.mxu0 0.0
    %234 = vmatpush.msra.mxu0 0.0
    %235 = vmatpush.msra.mxu0 0.0
    %236 = vmatpush.msra.mxu0 0.0
    %237 = vmatpush.msra.mxu0 0.0
    %238 = vmatpush.msra.mxu0 0.0
    %239 = vmatpush.msra.mxu0 0.0
    %240 = vmatpush.msra.mxu0 0.0
    %241 = vmatpush.msra.mxu0 0.0
    %242 = vmatpush.msra.mxu0 0.0
    %243 = vmatpush.msra.mxu0 %v201
    %244 = vmatpush.msra.mxu0 %v199
    %245 = vmatpush.msra.mxu0 %v197
    %246 = vmatpush.msra.mxu0 %v195
    %247 = vmatmul.f32.gmra.mxu0 %v203
    %v248 = vpop.f32.mrf.mxu0
    %v249 = vadd.f32 0.0, %v248
    %250 = vmatmul.f32.gmra.mxu0 %v206
    %v251 = vpop.f32.mrf.mxu0
    %v252 = vadd.f32 0.0, %v251
    %253 = vdwg.mxu0
    %v254 = vmul.f32 %v226, %v129
    %v255 = vmul.f32 %v229, %v130
    %258 = vrot.lane.b32.xlu0 %v131, 32
    %v259 = vpop.permute.xlu0 %258
    %260 = vrot.lane.b32.xlu0 %v132, 32
    %v261 = vpop.permute.xlu0 %260
    %v264 = vmul.f32 %v226, %v259
    %v265 = vmul.f32 %v229, %v261
    %268 = vrot.lane.b32.xlu0 %v264, 96
    %v269 = vpop.permute.xlu0 %268
    %270 = vrot.lane.b32.xlu0 %v265, 96
    %v271 = vpop.permute.xlu0 %270
    %v274 = vadd.f32 %v254, %v269
    %v275 = vadd.f32 %v255, %v271
    %278 = vrot.lane.b32.xlu0 %v129, 64
    %v279 = vpop.permute.xlu0 %278
    %280 = vrot.lane.b32.xlu0 %v130, 64
    %v281 = vpop.permute.xlu0 %280
    %v284 = vmul.f32 %v226, %v279
    %v285 = vmul.f32 %v229, %v281
    %286 = vrot.lane.b32.xlu0 %v131, 96
    %v287 = vpop.permute.xlu0 %286
    %288 = vrot.lane.b32.xlu0 %v132, 96
    %v289 = vpop.permute.xlu0 %288
    %v292 = vmul.f32 %v226, %v287
    %v293 = vmul.f32 %v229, %v289
    %296 = vrot.lane.b32.xlu0 %v292, 96
    %v297 = vpop.permute.xlu0 %296
    %298 = vrot.lane.b32.xlu0 %v293, 96
    %v299 = vpop.permute.xlu0 %298
    %v302 = vadd.f32 %v284, %v297
    %v303 = vadd.f32 %v285, %v299
    %305 = vrot.lane.b32.xlu0 %v302, 64
    %v306 = vpop.permute.xlu0 %305
    %vm307 = vcmask 130048
    %v309 = vsel %vm307, %v274, 0
    %v311 = vsel %vm307, %v306, 0
    %313 = vmatpush.xpose.msra.mxu0 0.0
    %314 = vmatpush.xpose.msra.mxu0 0.0
    %315 = vmatpush.xpose.msra.mxu0 0.0
    %316 = vmatpush.xpose.msra.mxu0 0.0
    %317 = vmatpush.xpose.msra.mxu0 0.0
    %318 = vmatpush.xpose.msra.mxu0 0.0
    %319 = vmatpush.xpose.msra.mxu0 0.0
    %320 = vmatpush.xpose.msra.mxu0 0.0
    %321 = vmatpush.xpose.msra.mxu0 0.0
    %322 = vmatpush.xpose.msra.mxu0 0.0
    %323 = vmatpush.xpose.msra.mxu0 0.0
    %324 = vmatpush.xpose.msra.mxu0 0.0
    %325 = vmatpush.xpose.msra.mxu0 0.0
    %326 = vmatpush.xpose.msra.mxu0 0.0
    %327 = vmatpush.xpose.msra.mxu0 0.0
    %328 = vmatpush.xpose.msra.mxu0 %v311
    %329 = vmatmul.f32.gmra.mxu0 %v309
    %v330 = vpop.f32.mrf.mxu0
    %v331 = vadd.f32 %v133, %v330
    %332 = vdwg.mxu0
    %334 = vrot.lane.b32.xlu0 %v303, 64
    %v335 = vpop.permute.xlu0 %334
    %v337 = vsel %vm307, %v275, 0
    %v339 = vsel %vm307, %v335, 0
    %341 = vmatpush.xpose.msra.mxu0 0.0
    %342 = vmatpush.xpose.msra.mxu0 0.0
    %343 = vmatpush.xpose.msra.mxu0 0.0
    %344 = vmatpush.xpose.msra.mxu0 0.0
    %345 = vmatpush.xpose.msra.mxu0 0.0
    %346 = vmatpush.xpose.msra.mxu0 0.0
    %347 = vmatpush.xpose.msra.mxu0 0.0
    %348 = vmatpush.xpose.msra.mxu0 0.0
    %349 = vmatpush.xpose.msra.mxu0 0.0
    %350 = vmatpush.xpose.msra.mxu0 0.0
    %351 = vmatpush.xpose.msra.mxu0 0.0
    %352 = vmatpush.xpose.msra.mxu0 0.0
    %353 = vmatpush.xpose.msra.mxu0 0.0
    %354 = vmatpush.xpose.msra.mxu0 0.0
    %355 = vmatpush.xpose.msra.mxu0 0.0
    %356 = vmatpush.xpose.msra.mxu0 %v339
    %357 = vmatmul.f32.gmra.mxu0 %v337
    %v358 = vpop.f32.mrf.mxu0
    %v359 = vadd.f32 %v134, %v358
    %360 = vdwg.mxu0
    %vm361 = vcmask 64512
    %v362 = vsel %vm361, %v331, -inf
    %363 = vmax.xlane.f32.xlu0 %v362
    %v364 = vpop.xlane.xlu0 %363
    %v365 = vsel %vm361, %v359, -inf
    %366 = vmax.xlane.f32.xlu0 %v365
    %v367 = vpop.xlane.xlu0 %366
    %v368 = vsub.f32 %v331, %v364
    %v369 = vsub.f32 %v359, %v367
    %v370 = vmul.f32 %v368, 1.442695
    %v371 = vpow.pop %v370
    %v372 = vmul.f32 %v369, 1.442695
    %v373 = vpow.pop %v372
    %v374 = vsel %vm361, %v371, 0.0
    %375 = vadd.xlane.f32.xlu0 %v374
    %v376 = vpop.xlane.xlu0 %375
    %v377 = vsel %vm361, %v373, 0.0
    %378 = vadd.xlane.f32.xlu0 %v377
    %v379 = vpop.xlane.xlu0 %378
    %v380 = vrcp.pop %v376
    %v381 = vrcp.pop %v379
    %v382 = vmul.f32 %v371, %v380
    %v383 = vmul.f32 %v373, %v381
    %v385 = vsel %vm361, %v382, 0
    %387 = vmatpush.msra.mxu0 0.0
    %388 = vmatpush.msra.mxu0 0.0
    %389 = vmatpush.msra.mxu0 0.0
    %390 = vmatpush.msra.mxu0 0.0
    %391 = vmatpush.msra.mxu0 0.0
    %392 = vmatpush.msra.mxu0 0.0
    %393 = vmatpush.msra.mxu0 0.0
    %394 = vmatpush.msra.mxu0 0.0
    %395 = vmatpush.msra.mxu0 0.0
    %396 = vmatpush.msra.mxu0 0.0
    %397 = vmatpush.msra.mxu0 0.0
    %398 = vmatpush.msra.mxu0 0.0
    %399 = vmatpush.msra.mxu0 0.0
    %400 = vmatpush.msra.mxu0 0.0
    %401 = vmatpush.msra.mxu0 0.0
    %402 = vmatpush.msra.mxu0 %v249
    %403 = vmatmul.f32.gmra.mxu0 %v385
    %v404 = vpop.f32.mrf.mxu0
    %v405 = vadd.f32 0.0, %v404
    %406 = vdwg.mxu0
    %v408 = vsel %vm361, %v383, 0
    %410 = vmatpush.msra.mxu0 0.0
    %411 = vmatpush.msra.mxu0 0.0
    %412 = vmatpush.msra.mxu0 0.0
    %413 = vmatpush.msra.mxu0 0.0
    %414 = vmatpush.msra.mxu0 0.0
    %415 = vmatpush.msra.mxu0 0.0
    %416 = vmatpush.msra.mxu0 0.0
    %417 = vmatpush.msra.mxu0 0.0
    %418 = vmatpush.msra.mxu0 0.0
    %419 = vmatpush.msra.mxu0 0.0
    %420 = vmatpush.msra.mxu0 0.0
    %421 = vmatpush.msra.mxu0 0.0
    %422 = vmatpush.msra.mxu0 0.0
    %423 = vmatpush.msra.mxu0 0.0
    %424 = vmatpush.msra.mxu0 0.0
    %425 = vmatpush.msra.mxu0 %v252
    %426 = vmatmul.f32.gmra.mxu0 %v408
    %v427 = vpop.f32.mrf.mxu0
    %v428 = vadd.f32 0.0, %v427
    %429 = vdwg.mxu0
    %v430 = vld [vmem:[%s5] sm:$0xff]
    %v431 = vld [vmem:[%s5 + $0x8] sm:$0xff]
    %432 = vrot.lane.b32.xlu0 %v274, 112
    %v433 = vpop.permute.xlu0 %432
    %434 = vrot.lane.b32.xlu0 %v302, 48
    %v435 = vpop.permute.xlu0 %434
    %v436 = vsel %vm307, %v433, 0
    %v438 = vsel %vm307, %v435, 0
    %440 = vmatpush.xpose.msra.mxu0 0.0
    %441 = vmatpush.xpose.msra.mxu0 0.0
    %442 = vmatpush.xpose.msra.mxu0 0.0
    %443 = vmatpush.xpose.msra.mxu0 0.0
    %444 = vmatpush.xpose.msra.mxu0 0.0
    %445 = vmatpush.xpose.msra.mxu0 0.0
    %446 = vmatpush.xpose.msra.mxu0 0.0
    %447 = vmatpush.xpose.msra.mxu0 0.0
    %448 = vmatpush.xpose.msra.mxu0 0.0
    %449 = vmatpush.xpose.msra.mxu0 0.0
    %450 = vmatpush.xpose.msra.mxu0 0.0
    %451 = vmatpush.xpose.msra.mxu0 0.0
    %452 = vmatpush.xpose.msra.mxu0 0.0
    %453 = vmatpush.xpose.msra.mxu0 0.0
    %454 = vmatpush.xpose.msra.mxu0 0.0
    %455 = vmatpush.xpose.msra.mxu0 %v438
    %456 = vmatmul.f32.gmra.mxu0 %v436
    %v457 = vpop.f32.mrf.mxu0
    %v458 = vadd.f32 %v133, %v457
    %459 = vdwg.mxu0
    %460 = vrot.lane.b32.xlu0 %v275, 112
    %v461 = vpop.permute.xlu0 %460
    %462 = vrot.lane.b32.xlu0 %v303, 48
    %v463 = vpop.permute.xlu0 %462
    %v464 = vsel %vm307, %v461, 0
    %v466 = vsel %vm307, %v463, 0
    %468 = vmatpush.xpose.msra.mxu0 0.0
    %469 = vmatpush.xpose.msra.mxu0 0.0
    %470 = vmatpush.xpose.msra.mxu0 0.0
    %471 = vmatpush.xpose.msra.mxu0 0.0
    %472 = vmatpush.xpose.msra.mxu0 0.0
    %473 = vmatpush.xpose.msra.mxu0 0.0
    %474 = vmatpush.xpose.msra.mxu0 0.0
    %475 = vmatpush.xpose.msra.mxu0 0.0
    %476 = vmatpush.xpose.msra.mxu0 0.0
    %477 = vmatpush.xpose.msra.mxu0 0.0
    %478 = vmatpush.xpose.msra.mxu0 0.0
    %479 = vmatpush.xpose.msra.mxu0 0.0
    %480 = vmatpush.xpose.msra.mxu0 0.0
    %481 = vmatpush.xpose.msra.mxu0 0.0
    %482 = vmatpush.xpose.msra.mxu0 0.0
    %483 = vmatpush.xpose.msra.mxu0 %v466
    %484 = vmatmul.f32.gmra.mxu0 %v464
    %v485 = vpop.f32.mrf.mxu0
    %v486 = vadd.f32 %v134, %v485
    %487 = vdwg.mxu0
    %v488 = vsel %vm361, %v458, -inf
    %489 = vmax.xlane.f32.xlu0 %v488
    %v490 = vpop.xlane.xlu0 %489
    %v491 = vsel %vm361, %v486, -inf
    %492 = vmax.xlane.f32.xlu0 %v491
    %v493 = vpop.xlane.xlu0 %492
    %v494 = vsub.f32 %v458, %v490
    %v495 = vsub.f32 %v486, %v493
    %v496 = vmul.f32 %v494, 1.442695
    %v497 = vpow.pop %v496
    %v498 = vmul.f32 %v495, 1.442695
    %v499 = vpow.pop %v498
    %v500 = vsel %vm361, %v497, 0.0
    %501 = vadd.xlane.f32.xlu0 %v500
    %v502 = vpop.xlane.xlu0 %501
    %v503 = vsel %vm361, %v499, 0.0
    %504 = vadd.xlane.f32.xlu0 %v503
    %v505 = vpop.xlane.xlu0 %504
    %v506 = vrcp.pop %v502
    %v507 = vrcp.pop %v505
    %v508 = vmul.f32 %v497, %v506
    %v509 = vmul.f32 %v499, %v507
    %511 = vrot.lane.b32.xlu0 %v249, 112
    %v512 = vpop.permute.xlu0 %511
    %v515 = vsel %vm361, %v508, 0
    %517 = vmatpush.msra.mxu0 0.0
    %518 = vmatpush.msra.mxu0 0.0
    %519 = vmatpush.msra.mxu0 0.0
    %520 = vmatpush.msra.mxu0 0.0
    %521 = vmatpush.msra.mxu0 0.0
    %522 = vmatpush.msra.mxu0 0.0
    %523 = vmatpush.msra.mxu0 0.0
    %524 = vmatpush.msra.mxu0 0.0
    %525 = vmatpush.msra.mxu0 0.0
    %526 = vmatpush.msra.mxu0 0.0
    %527 = vmatpush.msra.mxu0 0.0
    %528 = vmatpush.msra.mxu0 0.0
    %529 = vmatpush.msra.mxu0 0.0
    %530 = vmatpush.msra.mxu0 0.0
    %531 = vmatpush.msra.mxu0 0.0
    %532 = vmatpush.msra.mxu0 %v512
    %533 = vmatmul.f32.gmra.mxu0 %v515
    %v534 = vpop.f32.mrf.mxu0
    %v535 = vadd.f32 0.0, %v534
    %536 = vdwg.mxu0
    %538 = vrot.lane.b32.xlu0 %v252, 112
    %v539 = vpop.permute.xlu0 %538
    %v542 = vsel %vm361, %v509, 0
    %544 = vmatpush.msra.mxu0 0.0
    %545 = vmatpush.msra.mxu0 0.0
    %546 = vmatpush.msra.mxu0 0.0
    %547 = vmatpush.msra.mxu0 0.0
    %548 = vmatpush.msra.mxu0 0.0
    %549 = vmatpush.msra.mxu0 0.0
    %550 = vmatpush.msra.mxu0 0.0
    %551 = vmatpush.msra.mxu0 0.0
    %552 = vmatpush.msra.mxu0 0.0
    %553 = vmatpush.msra.mxu0 0.0
    %554 = vmatpush.msra.mxu0 0.0
    %555 = vmatpush.msra.mxu0 0.0
    %556 = vmatpush.msra.mxu0 0.0
    %557 = vmatpush.msra.mxu0 0.0
    %558 = vmatpush.msra.mxu0 0.0
    %559 = vmatpush.msra.mxu0 %v539
    %560 = vmatmul.f32.gmra.mxu0 %v542
    %v561 = vpop.f32.mrf.mxu0
    %v562 = vadd.f32 0.0, %v561
    %563 = vdwg.mxu0
    %v564 = vld [vmem:[%s5 + $0x10] sm:$0xff]
    %v565 = vld [vmem:[%s5 + $0x18] sm:$0xff]
    %v567 = vsel %vm307, %v535, 0
    %v570 = vsel %vm307, %v562, 0
    %572 = vmatpush.msra.mxu0 0.0
    %573 = vmatpush.msra.mxu0 0.0
    %574 = vmatpush.msra.mxu0 0.0
    %575 = vmatpush.msra.mxu0 0.0
    %576 = vmatpush.msra.mxu0 0.0
    %577 = vmatpush.msra.mxu0 0.0
    %578 = vmatpush.msra.mxu0 0.0
    %579 = vmatpush.msra.mxu0 0.0
    %580 = vmatpush.msra.mxu0 0.0
    %581 = vmatpush.msra.mxu0 0.0
    %582 = vmatpush.msra.mxu0 0.0
    %583 = vmatpush.msra.mxu0 0.0
    %584 = vmatpush.msra.mxu0 0.0
    %585 = vmatpush.msra.mxu0 0.0
    %586 = vmatpush.msra.mxu0 %v565
    %587 = vmatpush.msra.mxu0 %v564
    %588 = vmatmul.f32.gmra.mxu0 %v567
    %v589 = vpop.f32.mrf.mxu0
    %v590 = vadd.f32 0.0, %v589
    %591 = vmatmul.f32.gmra.mxu0 %v570
    %v592 = vpop.f32.mrf.mxu0
    %v593 = vadd.f32 0.0, %v592
    %594 = vdwg.mxu0
    %v596 = vsel %vm307, %v405, 0
    %v599 = vsel %vm307, %v428, 0
    %601 = vmatpush.msra.mxu0 0.0
    %602 = vmatpush.msra.mxu0 0.0
    %603 = vmatpush.msra.mxu0 0.0
    %604 = vmatpush.msra.mxu0 0.0
    %605 = vmatpush.msra.mxu0 0.0
    %606 = vmatpush.msra.mxu0 0.0
    %607 = vmatpush.msra.mxu0 0.0
    %608 = vmatpush.msra.mxu0 0.0
    %609 = vmatpush.msra.mxu0 0.0
    %610 = vmatpush.msra.mxu0 0.0
    %611 = vmatpush.msra.mxu0 0.0
    %612 = vmatpush.msra.mxu0 0.0
    %613 = vmatpush.msra.mxu0 0.0
    %614 = vmatpush.msra.mxu0 0.0
    %615 = vmatpush.msra.mxu0 %v431
    %616 = vmatpush.msra.mxu0 %v430
    %617 = vmatmul.f32.gmra.mxu0 %v596
    %v618 = vpop.f32.mrf.mxu0
    %v619 = vadd.f32 %v590, %v618
    %620 = vmatmul.f32.gmra.mxu0 %v599
    %v621 = vpop.f32.mrf.mxu0
    %v622 = vadd.f32 %v593, %v621
    %623 = vdwg.mxu0
    %v624 = vadd.f32 %v127, %v619
    %v625 = vadd.f32 %v128, %v622
    %v626 = vsel %vm136, %v624, 0.0
    %627 = vadd.xlane.f32.xlu0 %v626
    %v628 = vpop.xlane.xlu0 %627
    %v629 = vsel %vm136, %v625, 0.0
    %630 = vadd.xlane.f32.xlu0 %v629
    %v631 = vpop.xlane.xlu0 %630
    %v632 = vmul.f32 %v628, %v149
    %v633 = vmul.f32 %v631, %v149
    %v634 = vsub.f32 %v624, %v632
    %v635 = vsub.f32 %v625, %v633
    %v636 = vmul.f32 %v634, %v634
    %v637 = vmul.f32 %v635, %v635
    %v638 = vsel %vm136, %v636, 0.0
    %639 = vadd.xlane.f32.xlu0 %v638
    %v640 = vpop.xlane.xlu0 %639
    %v641 = vsel %vm136, %v637, 0.0
    %642 = vadd.xlane.f32.xlu0 %v641
    %v643 = vpop.xlane.xlu0 %642
    %v644 = vmul.f32 %v640, %v149
    %v645 = vmul.f32 %v643, %v149
    %v646 = vadd.f32 %v644, 1e-05
    %v647 = vadd.f32 %v645, 1e-05
    %v648 = vrsqrt.pop %v646
    %v649 = vmul.f32 %v648, %v646
    %v650 = vmul.f32 %v649, %v648
    %v651 = vmul.f32 0.5, %v650
    %v652 = vsub.f32 1.5, %v651
    %v653 = vmul.f32 %v648, %v652
    %vm654 = vweird.f32 %v646
    %vm655 = vweird.f32 %v648
    %vm656 = vmor %vm654, %vm655
    %v657 = vsel %vm656, %v648, %v653
    %v658 = vrsqrt.pop %v647
    %v659 = vmul.f32 %v658, %v647
    %v660 = vmul.f32 %v659, %v658
    %v661 = vmul.f32 0.5, %v660
    %v662 = vsub.f32 1.5, %v661
    %v663 = vmul.f32 %v658, %v662
    %vm664 = vweird.f32 %v647
    %vm665 = vweird.f32 %v658
    %vm666 = vmor %vm664, %vm665
    %v667 = vsel %vm666, %v658, %v663
    %v668 = vmul.f32 %v634, %v657
    %v669 = vmul.f32 %v635, %v667
    %v670 = vperm.slane %v135, 2
    %v671 = vmul.f32 %v668, %v670
    %v672 = vmul.f32 %v669, %v670
    %v673 = vperm.slane %v135, 3
    %v674 = vadd.f32 %v671, %v673
    %v675 = vadd.f32 %v672, %v673
    %v676 = vld [vmem:[#allocation10] sm:$0xff]
    %v677 = vld [vmem:[#allocation10 + $0x8] sm:$0xff]
    %v678 = vld [vmem:[#allocation10 + $0x10] sm:$0xff]
    %v679 = vld [vmem:[#allocation10 + $0x18] sm:$0xff]
    %v681 = vsel %vm136, %v674, 0
    %v684 = vsel %vm136, %v675, 0
    %686 = vmatpush.msra.mxu0 0.0
    %687 = vmatpush.msra.mxu0 0.0
    %688 = vmatpush.msra.mxu0 0.0
    %689 = vmatpush.msra.mxu0 0.0
    %690 = vmatpush.msra.mxu0 0.0
    %691 = vmatpush.msra.mxu0 0.0
    %692 = vmatpush.msra.mxu0 0.0
    %693 = vmatpush.msra.mxu0 0.0
    %694 = vmatpush.msra.mxu0 0.0
    %695 = vmatpush.msra.mxu0 0.0
    %696 = vmatpush.msra.mxu0 0.0
    %697 = vmatpush.msra.mxu0 0.0
    %698 = vmatpush.msra.mxu0 %v679
    %699 = vmatpush.msra.mxu0 %v678
    %700 = vmatpush.msra.mxu0 %v677
    %701 = vmatpush.msra.mxu0 %v676
    %702 = vmatmul.f32.gmra.mxu0 %v681
    %v703 = vpop.f32.mrf.mxu0
    %v704 = vadd.f32 0.0, %v703
    %705 = vmatmul.f32.gmra.mxu0 %v684
    %v706 = vpop.f32.mrf.mxu0
    %v707 = vadd.f32 0.0, %v706
    %708 = vdwg.mxu0
    %v709 = vmul.f32 %v704, %v704
    %v710 = vmul.f32 %v707, %v707
    %v711 = vmul.f32 %v704, %v709
    %v712 = vmul.f32 %v707, %v710
    %v713 = vmul.f32 %v711, 0.044715
    %v714 = vmul.f32 %v712, 0.044715
    %v715 = vadd.f32 %v704, %v713
    %v716 = vadd.f32 %v707, %v714
    %v717 = vmul.f32 %v715, 0.7978846
    %v718 = vmul.f32 %v716, 0.7978846
    %v719 = vtanh.pop %v717
    %v720 = vtanh.pop %v718
    %v721 = vadd.f32 %v719, 1.0
    %v722 = vadd.f32 %v720, 1.0
    %v723 = vmul.f32 %v721, 0.5
    %v724 = vmul.f32 %v722, 0.5
    %v725 = vmul.f32 %v704, %v723
    %v726 = vmul.f32 %v707, %v724
    %v727 = vld [vmem:[%s7] sm:$0xff]
    %v728 = vld [vmem:[%s7 + $0x8] sm:$0xff]
    %v729 = vld [vmem:[%s7 + $0x10] sm:$0xff]
    %v730 = vld [vmem:[%s7 + $0x18] sm:$0xff]
    %v731 = vld [vmem:[%s7 + $0x20] sm:$0xff]
    %v732 = vld [vmem:[%s7 + $0x28] sm:$0xff]
    %v733 = vld [vmem:[%s7 + $0x30] sm:$0xff]
    %v734 = vld [vmem:[%s7 + $0x38] sm:$0xff]
    %vm735 = vcmask 523264
    %v737 = vsel %vm735, %v725, 0
    %v740 = vsel %vm735, %v726, 0
    %742 = vmatpush.msra.mxu0 0.0
    %743 = vmatpush.msra.mxu0 0.0
    %744 = vmatpush.msra.mxu0 0.0
    %745 = vmatpush.msra.mxu0 0.0
    %746 = vmatpush.msra.mxu0 0.0
    %747 = vmatpush.msra.mxu0 0.0
    %748 = vmatpush.msra.mxu0 0.0
    %749 = vmatpush.msra.mxu0 0.0
    %750 = vmatpush.msra.mxu0 %v734
    %751 = vmatpush.msra.mxu0 %v733
    %752 = vmatpush.msra.mxu0 %v732
    %753 = vmatpush.msra.mxu0 %v731
    %754 = vmatpush.msra.mxu0 %v730
    %755 = vmatpush.msra.mxu0 %v729
    %756 = vmatpush.msra.mxu0 %v728
    %757 = vmatpush.msra.mxu0 %v727
    %758 = vmatmul.f32.gmra.mxu0 %v737
    %v759 = vpop.f32.mrf.mxu0
    %v760 = vadd.f32 0.0, %v759
    %761 = vmatmul.f32.gmra.mxu0 %v740
    %v762 = vpop.f32.mrf.mxu0
    %v763 = vadd.f32 0.0, %v762
    %764 = vdwg.mxu0
    %v765 = vadd.f32 %v624, %v760
    %v766 = vadd.f32 %v625, %v763
    %s767 = scalar_lea.vmem [#allocation11], 4
    %v768 = vld [vmem:[%s767] sm:$0xf]
    %v769 = vsel %vm136, %v765, 0.0
    %770 = vadd.xlane.f32.xlu0 %v769
    %v771 = vpop.xlane.xlu0 %770
    %v772 = vsel %vm136, %v766, 0.0
    %773 = vadd.xlane.f32.xlu0 %v772
    %v774 = vpop.xlane.xlu0 %773
    %v775 = vmul.f32 %v771, %v149
    %v776 = vmul.f32 %v774, %v149
    %v777 = vsub.f32 %v765, %v775
    %v778 = vsub.f32 %v766, %v776
    %v779 = vmul.f32 %v777, %v777
    %v780 = vmul.f32 %v778, %v778
    %v781 = vsel %vm136, %v779, 0.0
    %782 = vadd.xlane.f32.xlu0 %v781
    %v783 = vpop.xlane.xlu0 %782
    %v784 = vsel %vm136, %v780, 0.0
    %785 = vadd.xlane.f32.xlu0 %v784
    %v786 = vpop.xlane.xlu0 %785
    %v787 = vmul.f32 %v783, %v149
    %v788 = vmul.f32 %v786, %v149
    %v789 = vadd.f32 %v787, 1e-05
    %v790 = vadd.f32 %v788, 1e-05
    %v791 = vrsqrt.pop %v789
    %v792 = vmul.f32 %v791, %v789
    %v793 = vmul.f32 %v792, %v791
    %v794 = vmul.f32 0.5, %v793
    %v795 = vsub.f32 1.5, %v794
    %v796 = vmul.f32 %v791, %v795
    %vm797 = vweird.f32 %v789
    %vm798 = vweird.f32 %v791
    %vm799 = vmor %vm797, %vm798
    %v800 = vsel %vm799, %v791, %v796
    %v801 = vrsqrt.pop %v790
    %v802 = vmul.f32 %v801, %v790
    %v803 = vmul.f32 %v802, %v801
    %v804 = vmul.f32 0.5, %v803
    %v805 = vsub.f32 1.5, %v804
    %v806 = vmul.f32 %v801, %v805
    %vm807 = vweird.f32 %v790
    %vm808 = vweird.f32 %v801
    %vm809 = vmor %vm807, %vm808
    %v810 = vsel %vm809, %v801, %v806
    %v811 = vmul.f32 %v777, %v800
    %v812 = vmul.f32 %v778, %v810
    %v813 = vperm.slane %v768, 0
    %v814 = vmul.f32 %v811, %v813
    %v815 = vmul.f32 %v812, %v813
    %v816 = vperm.slane %v768, 1
    %v817 = vadd.f32 %v814, %v816
    %v818 = vadd.f32 %v815, %v816
    %s819 = scalar_lea.vmem %s4, 64
    %v820 = vld [vmem:[%s819] sm:$0xff]
    %v821 = vld [vmem:[%s819 + $0x8] sm:$0xff]
    %v822 = vld [vmem:[%s819 + $0x10] sm:$0xff]
    %v823 = vld [vmem:[%s819 + $0x18] sm:$0xff]
    %v824 = vld [vmem:[%s819 + $0x20] sm:$0xff]
    %v825 = vld [vmem:[%s819 + $0x28] sm:$0xff]
    %v826 = vld [vmem:[%s819 + $0x30] sm:$0xff]
    %v827 = vld [vmem:[%s819 + $0x38] sm:$0xff]
    %v829 = vsel %vm136, %v817, 0
    %v832 = vsel %vm136, %v818, 0
    %834 = vmatpush.msra.mxu0 0.0
    %835 = vmatpush.msra.mxu0 0.0
    %836 = vmatpush.msra.mxu0 0.0
    %837 = vmatpush.msra.mxu0 0.0
    %838 = vmatpush.msra.mxu0 0.0
    %839 = vmatpush.msra.mxu0 0.0
    %840 = vmatpush.msra.mxu0 0.0
    %841 = vmatpush.msra.mxu0 0.0
    %842 = vmatpush.msra.mxu0 0.0
    %843 = vmatpush.msra.mxu0 0.0
    %844 = vmatpush.msra.mxu0 0.0
    %845 = vmatpush.msra.mxu0 0.0
    %846 = vmatpush.msra.mxu0 %v826
    %847 = vmatpush.msra.mxu0 %v824
    %848 = vmatpush.msra.mxu0 %v822
    %849 = vmatpush.msra.mxu0 %v820
    %850 = vmatmul.f32.gmra.mxu0 %v829
    %v851 = vpop.f32.mrf.mxu0
    %v852 = vadd.f32 0.0, %v851
    %853 = vmatmul.f32.gmra.mxu0 %v832
    %v854 = vpop.f32.mrf.mxu0
    %v855 = vadd.f32 0.0, %v854
    %856 = vdwg.mxu0
    %857 = vmatpush.msra.mxu0 0.0
    %858 = vmatpush.msra.mxu0 0.0
    %859 = vmatpush.msra.mxu0 0.0
    %860 = vmatpush.msra.mxu0 0.0
    %861 = vmatpush.msra.mxu0 0.0
    %862 = vmatpush.msra.mxu0 0.0
    %863 = vmatpush.msra.mxu0 0.0
    %864 = vmatpush.msra.mxu0 0.0
    %865 = vmatpush.msra.mxu0 0.0
    %866 = vmatpush.msra.mxu0 0.0
    %867 = vmatpush.msra.mxu0 0.0
    %868 = vmatpush.msra.mxu0 0.0
    %869 = vmatpush.msra.mxu0 %v827
    %870 = vmatpush.msra.mxu0 %v825
    %871 = vmatpush.msra.mxu0 %v823
    %872 = vmatpush.msra.mxu0 %v821
    %873 = vmatmul.f32.gmra.mxu0 %v829
    %v874 = vpop.f32.mrf.mxu0
    %v875 = vadd.f32 0.0, %v874
    %876 = vmatmul.f32.gmra.mxu0 %v832
    %v877 = vpop.f32.mrf.mxu0
    %v878 = vadd.f32 0.0, %v877
    %879 = vdwg.mxu0
    %v880 = vmul.f32 %v852, %v129
    %v881 = vmul.f32 %v855, %v130
    %v882 = vmul.f32 %v852, %v259
    %v883 = vmul.f32 %v855, %v261
    %886 = vrot.lane.b32.xlu0 %v882, 96
    %v887 = vpop.permute.xlu0 %886
    %888 = vrot.lane.b32.xlu0 %v883, 96
    %v889 = vpop.permute.xlu0 %888
    %v892 = vadd.f32 %v880, %v887
    %v893 = vadd.f32 %v881, %v889
    %v894 = vmul.f32 %v852, %v279
    %v895 = vmul.f32 %v855, %v281
    %v896 = vmul.f32 %v852, %v287
    %v897 = vmul.f32 %v855, %v289
    %900 = vrot.lane.b32.xlu0 %v896, 96
    %v901 = vpop.permute.xlu0 %900
    %902 = vrot.lane.b32.xlu0 %v897, 96
    %v903 = vpop.permute.xlu0 %902
    %v906 = vadd.f32 %v894, %v901
    %v907 = vadd.f32 %v895, %v903
    %909 = vrot.lane.b32.xlu0 %v906, 64
    %v910 = vpop.permute.xlu0 %909
    %v912 = vsel %vm307, %v892, 0
    %v914 = vsel %vm307, %v910, 0
    %916 = vmatpush.xpose.msra.mxu0 0.0
    %917 = vmatpush.xpose.msra.mxu0 0.0
    %918 = vmatpush.xpose.msra.mxu0 0.0
    %919 = vmatpush.xpose.msra.mxu0 0.0
    %920 = vmatpush.xpose.msra.mxu0 0.0
    %921 = vmatpush.xpose.msra.mxu0 0.0
    %922 = vmatpush.xpose.msra.mxu0 0.0
    %923 = vmatpush.xpose.msra.mxu0 0.0
    %924 = vmatpush.xpose.msra.mxu0 0.0
    %925 = vmatpush.xpose.msra.mxu0 0.0
    %926 = vmatpush.xpose.msra.mxu0 0.0
    %927 = vmatpush.xpose.msra.mxu0 0.0
    %928 = vmatpush.xpose.msra.mxu0 0.0
    %929 = vmatpush.xpose.msra.mxu0 0.0
    %930 = vmatpush.xpose.msra.mxu0 0.0
    %931 = vmatpush.xpose.msra.mxu0 %v914
    %932 = vmatmul.f32.gmra.mxu0 %v912
    %v933 = vpop.f32.mrf.mxu0
    %v934 = vadd.f32 %v133, %v933
    %935 = vdwg.mxu0
    %937 = vrot.lane.b32.xlu0 %v907, 64
    %v938 = vpop.permute.xlu0 %937
    %v940 = vsel %vm307, %v893, 0
    %v942 = vsel %vm307, %v938, 0
    %944 = vmatpush.xpose.msra.mxu0 0.0
    %945 = vmatpush.xpose.msra.mxu0 0.0
    %946 = vmatpush.xpose.msra.mxu0 0.0
    %947 = vmatpush.xpose.msra.mxu0 0.0
    %948 = vmatpush.xpose.msra.mxu0 0.0
    %949 = vmatpush.xpose.msra.mxu0 0.0
    %950 = vmatpush.xpose.msra.mxu0 0.0
    %951 = vmatpush.xpose.msra.mxu0 0.0
    %952 = vmatpush.xpose.msra.mxu0 0.0
    %953 = vmatpush.xpose.msra.mxu0 0.0
    %954 = vmatpush.xpose.msra.mxu0 0.0
    %955 = vmatpush.xpose.msra.mxu0 0.0
    %956 = vmatpush.xpose.msra.mxu0 0.0
    %957 = vmatpush.xpose.msra.mxu0 0.0
    %958 = vmatpush.xpose.msra.mxu0 0.0
    %959 = vmatpush.xpose.msra.mxu0 %v942
    %960 = vmatmul.f32.gmra.mxu0 %v940
    %v961 = vpop.f32.mrf.mxu0
    %v962 = vadd.f32 %v134, %v961
    %963 = vdwg.mxu0
    %v964 = vsel %vm361, %v934, -inf
    %965 = vmax.xlane.f32.xlu0 %v964
    %v966 = vpop.xlane.xlu0 %965
    %v967 = vsel %vm361, %v962, -inf
    %968 = vmax.xlane.f32.xlu0 %v967
    %v969 = vpop.xlane.xlu0 %968
    %v970 = vsub.f32 %v934, %v966
    %v971 = vsub.f32 %v962, %v969
    %v972 = vmul.f32 %v970, 1.442695
    %v973 = vpow.pop %v972
    %v974 = vmul.f32 %v971, 1.442695
    %v975 = vpow.pop %v974
    %v976 = vsel %vm361, %v973, 0.0
    %977 = vadd.xlane.f32.xlu0 %v976
    %v978 = vpop.xlane.xlu0 %977
    %v979 = vsel %vm361, %v975, 0.0
    %980 = vadd.xlane.f32.xlu0 %v979
    %v981 = vpop.xlane.xlu0 %980
    %v982 = vrcp.pop %v978
    %v983 = vrcp.pop %v981
    %v984 = vmul.f32 %v973, %v982
    %v985 = vmul.f32 %v975, %v983
    %v987 = vsel %vm361, %v984, 0
    %989 = vmatpush.msra.mxu0 0.0
    %990 = vmatpush.msra.mxu0 0.0
    %991 = vmatpush.msra.mxu0 0.0
    %992 = vmatpush.msra.mxu0 0.0
    %993 = vmatpush.msra.mxu0 0.0
    %994 = vmatpush.msra.mxu0 0.0
    %995 = vmatpush.msra.mxu0 0.0
    %996 = vmatpush.msra.mxu0 0.0
    %997 = vmatpush.msra.mxu0 0.0
    %998 = vmatpush.msra.mxu0 0.0
    %999 = vmatpush.msra.mxu0 0.0
    %1000 = vmatpush.msra.mxu0 0.0
    %1001 = vmatpush.msra.mxu0 0.0
    %1002 = vmatpush.msra.mxu0 0.0
    %1003 = vmatpush.msra.mxu0 0.0
    %1004 = vmatpush.msra.mxu0 %v875
    %1005 = vmatmul.f32.gmra.mxu0 %v987
    %v1006 = vpop.f32.mrf.mxu0
    %v1007 = vadd.f32 0.0, %v1006
    %1008 = vdwg.mxu0
    %v1010 = vsel %vm361, %v985, 0
    %1012 = vmatpush.msra.mxu0 0.0
    %1013 = vmatpush.msra.mxu0 0.0
    %1014 = vmatpush.msra.mxu0 0.0
    %1015 = vmatpush.msra.mxu0 0.0
    %1016 = vmatpush.msra.mxu0 0.0
    %1017 = vmatpush.msra.mxu0 0.0
    %1018 = vmatpush.msra.mxu0 0.0
    %1019 = vmatpush.msra.mxu0 0.0
    %1020 = vmatpush.msra.mxu0 0.0
    %1021 = vmatpush.msra.mxu0 0.0
    %1022 = vmatpush.msra.mxu0 0.0
    %1023 = vmatpush.msra.mxu0 0.0
    %1024 = vmatpush.msra.mxu0 0.0
    %1025 = vmatpush.msra.mxu0 0.0
    %1026 = vmatpush.msra.mxu0 0.0
    %1027 = vmatpush.msra.mxu0 %v878
    %1028 = vmatmul.f32.gmra.mxu0 %v1010
    %v1029 = vpop.f32.mrf.mxu0
    %v1030 = vadd.f32 0.0, %v1029
    %1031 = vdwg.mxu0
    %s1032 = scalar_lea.vmem %s5, 32
    %v1033 = vld [vmem:[%s1032] sm:$0xff]
    %v1034 = vld [vmem:[%s1032 + $0x8] sm:$0xff]
    %1035 = vrot.lane.b32.xlu0 %v892, 112
    %v1036 = vpop.permute.xlu0 %1035
    %1037 = vrot.lane.b32.xlu0 %v906, 48
    %v1038 = vpop.permute.xlu0 %1037
    %v1039 = vsel %vm307, %v1036, 0
    %v1041 = vsel %vm307, %v1038, 0
    %1043 = vmatpush.xpose.msra.mxu0 0.0
    %1044 = vmatpush.xpose.msra.mxu0 0.0
    %1045 = vmatpush.xpose.msra.mxu0 0.0
    %1046 = vmatpush.xpose.msra.mxu0 0.0
    %1047 = vmatpush.xpose.msra.mxu0 0.0
    %1048 = vmatpush.xpose.msra.mxu0 0.0
    %1049 = vmatpush.xpose.msra.mxu0 0.0
    %1050 = vmatpush.xpose.msra.mxu0 0.0
    %1051 = vmatpush.xpose.msra.mxu0 0.0
    %1052 = vmatpush.xpose.msra.mxu0 0.0
    %1053 = vmatpush.xpose.msra.mxu0 0.0
    %1054 = vmatpush.xpose.msra.mxu0 0.0
    %1055 = vmatpush.xpose.msra.mxu0 0.0
    %1056 = vmatpush.xpose.msra.mxu0 0.0
    %1057 = vmatpush.xpose.msra.mxu0 0.0
    %1058 = vmatpush.xpose.msra.mxu0 %v1041
    %1059 = vmatmul.f32.gmra.mxu0 %v1039
    %v1060 = vpop.f32.mrf.mxu0
    %v1061 = vadd.f32 %v133, %v1060
    %1062 = vdwg.mxu0
    %1063 = vrot.lane.b32.xlu0 %v893, 112
    %v1064 = vpop.permute.xlu0 %1063
    %1065 = vrot.lane.b32.xlu0 %v907, 48
    %v1066 = vpop.permute.xlu0 %1065
    %v1067 = vsel %vm307, %v1064, 0
    %v1069 = vsel %vm307, %v1066, 0
    %1071 = vmatpush.xpose.msra.mxu0 0.0
    %1072 = vmatpush.xpose.msra.mxu0 0.0
    %1073 = vmatpush.xpose.msra.mxu0 0.0
    %1074 = vmatpush.xpose.msra.mxu0 0.0
    %1075 = vmatpush.xpose.msra.mxu0 0.0
    %1076 = vmatpush.xpose.msra.mxu0 0.0
    %1077 = vmatpush.xpose.msra.mxu0 0.0
    %1078 = vmatpush.xpose.msra.mxu0 0.0
    %1079 = vmatpush.xpose.msra.mxu0 0.0
    %1080 = vmatpush.xpose.msra.mxu0 0.0
    %1081 = vmatpush.xpose.msra.mxu0 0.0
    %1082 = vmatpush.xpose.msra.mxu0 0.0
    %1083 = vmatpush.xpose.msra.mxu0 0.0
    %1084 = vmatpush.xpose.msra.mxu0 0.0
    %1085 = vmatpush.xpose.msra.mxu0 0.0
    %1086 = vmatpush.xpose.msra.mxu0 %v1069
    %1087 = vmatmul.f32.gmra.mxu0 %v1067
    %v1088 = vpop.f32.mrf.mxu0
    %v1089 = vadd.f32 %v134, %v1088
    %1090 = vdwg.mxu0
    %v1091 = vsel %vm361, %v1061, -inf
    %1092 = vmax.xlane.f32.xlu0 %v1091
    %v1093 = vpop.xlane.xlu0 %1092
    %v1094 = vsel %vm361, %v1089, -inf
    %1095 = vmax.xlane.f32.xlu0 %v1094
    %v1096 = vpop.xlane.xlu0 %1095
    %v1097 = vsub.f32 %v1061, %v1093
    %v1098 = vsub.f32 %v1089, %v1096
    %v1099 = vmul.f32 %v1097, 1.442695
    %v1100 = vpow.pop %v1099
    %v1101 = vmul.f32 %v1098, 1.442695
    %v1102 = vpow.pop %v1101
    %v1103 = vsel %vm361, %v1100, 0.0
    %1104 = vadd.xlane.f32.xlu0 %v1103
    %v1105 = vpop.xlane.xlu0 %1104
    %v1106 = vsel %vm361, %v1102, 0.0
    %1107 = vadd.xlane.f32.xlu0 %v1106
    %v1108 = vpop.xlane.xlu0 %1107
    %v1109 = vrcp.pop %v1105
    %v1110 = vrcp.pop %v1108
    %v1111 = vmul.f32 %v1100, %v1109
    %v1112 = vmul.f32 %v1102, %v1110
    %1114 = vrot.lane.b32.xlu0 %v875, 112
    %v1115 = vpop.permute.xlu0 %1114
    %v1118 = vsel %vm361, %v1111, 0
    %1120 = vmatpush.msra.mxu0 0.0
    %1121 = vmatpush.msra.mxu0 0.0
    %1122 = vmatpush.msra.mxu0 0.0
    %1123 = vmatpush.msra.mxu0 0.0
    %1124 = vmatpush.msra.mxu0 0.0
    %1125 = vmatpush.msra.mxu0 0.0
    %1126 = vmatpush.msra.mxu0 0.0
    %1127 = vmatpush.msra.mxu0 0.0
    %1128 = vmatpush.msra.mxu0 0.0
    %1129 = vmatpush.msra.mxu0 0.0
    %1130 = vmatpush.msra.mxu0 0.0
    %1131 = vmatpush.msra.mxu0 0.0
    %1132 = vmatpush.msra.mxu0 0.0
    %1133 = vmatpush.msra.mxu0 0.0
    %1134 = vmatpush.msra.mxu0 0.0
    %1135 = vmatpush.msra.mxu0 %v1115
    %1136 = vmatmul.f32.gmra.mxu0 %v1118
    %v1137 = vpop.f32.mrf.mxu0
    %v1138 = vadd.f32 0.0, %v1137
    %1139 = vdwg.mxu0
    %1141 = vrot.lane.b32.xlu0 %v878, 112
    %v1142 = vpop.permute.xlu0 %1141
    %v1145 = vsel %vm361, %v1112, 0
    %1147 = vmatpush.msra.mxu0 0.0
    %1148 = vmatpush.msra.mxu0 0.0
    %1149 = vmatpush.msra.mxu0 0.0
    %1150 = vmatpush.msra.mxu0 0.0
    %1151 = vmatpush.msra.mxu0 0.0
    %1152 = vmatpush.msra.mxu0 0.0
    %1153 = vmatpush.msra.mxu0 0.0
    %1154 = vmatpush.msra.mxu0 0.0
    %1155 = vmatpush.msra.mxu0 0.0
    %1156 = vmatpush.msra.mxu0 0.0
    %1157 = vmatpush.msra.mxu0 0.0
    %1158 = vmatpush.msra.mxu0 0.0
    %1159 = vmatpush.msra.mxu0 0.0
    %1160 = vmatpush.msra.mxu0 0.0
    %1161 = vmatpush.msra.mxu0 0.0
    %1162 = vmatpush.msra.mxu0 %v1142
    %1163 = vmatmul.f32.gmra.mxu0 %v1145
    %v1164 = vpop.f32.mrf.mxu0
    %v1165 = vadd.f32 0.0, %v1164
    %1166 = vdwg.mxu0
    %v1167 = vld [vmem:[%s1032 + $0x10] sm:$0xff]
    %v1168 = vld [vmem:[%s1032 + $0x18] sm:$0xff]
    %v1170 = vsel %vm307, %v1138, 0
    %v1173 = vsel %vm307, %v1165, 0
    %1175 = vmatpush.msra.mxu0 0.0
    %1176 = vmatpush.msra.mxu0 0.0
    %1177 = vmatpush.msra.mxu0 0.0
    %1178 = vmatpush.msra.mxu0 0.0
    %1179 = vmatpush.msra.mxu0 0.0
    %1180 = vmatpush.msra.mxu0 0.0
    %1181 = vmatpush.msra.mxu0 0.0
    %1182 = vmatpush.msra.mxu0 0.0
    %1183 = vmatpush.msra.mxu0 0.0
    %1184 = vmatpush.msra.mxu0 0.0
    %1185 = vmatpush.msra.mxu0 0.0
    %1186 = vmatpush.msra.mxu0 0.0
    %1187 = vmatpush.msra.mxu0 0.0
    %1188 = vmatpush.msra.mxu0 0.0
    %1189 = vmatpush.msra.mxu0 %v1168
    %1190 = vmatpush.msra.mxu0 %v1167
    %1191 = vmatmul.f32.gmra.mxu0 %v1170
    %v1192 = vpop.f32.mrf.mxu0
    %v1193 = vadd.f32 0.0, %v1192
    %1194 = vmatmul.f32.gmra.mxu0 %v1173
    %v1195 = vpop.f32.mrf.mxu0
    %v1196 = vadd.f32 0.0, %v1195
    %1197 = vdwg.mxu0
    %v1199 = vsel %vm307, %v1007, 0
    %v1202 = vsel %vm307, %v1030, 0
    %1204 = vmatpush.msra.mxu0 0.0
    %1205 = vmatpush.msra.mxu0 0.0
    %1206 = vmatpush.msra.mxu0 0.0
    %1207 = vmatpush.msra.mxu0 0.0
    %1208 = vmatpush.msra.mxu0 0.0
    %1209 = vmatpush.msra.mxu0 0.0
    %1210 = vmatpush.msra.mxu0 0.0
    %1211 = vmatpush.msra.mxu0 0.0
    %1212 = vmatpush.msra.mxu0 0.0
    %1213 = vmatpush.msra.mxu0 0.0
    %1214 = vmatpush.msra.mxu0 0.0
    %1215 = vmatpush.msra.mxu0 0.0
    %1216 = vmatpush.msra.mxu0 0.0
    %1217 = vmatpush.msra.mxu0 0.0
    %1218 = vmatpush.msra.mxu0 %v1034
    %1219 = vmatpush.msra.mxu0 %v1033
    %1220 = vmatmul.f32.gmra.mxu0 %v1199
    %v1221 = vpop.f32.mrf.mxu0
    %v1222 = vadd.f32 %v1193, %v1221
    %1223 = vmatmul.f32.gmra.mxu0 %v1202
    %v1224 = vpop.f32.mrf.mxu0
    %v1225 = vadd.f32 %v1196, %v1224
    %1226 = vdwg.mxu0
    %v1227 = vadd.f32 %v765, %v1222
    %v1228 = vadd.f32 %v766, %v1225
    %v1229 = vsel %vm136, %v1227, 0.0
    %1230 = vadd.xlane.f32.xlu0 %v1229
    %v1231 = vpop.xlane.xlu0 %1230
    %v1232 = vsel %vm136, %v1228, 0.0
    %1233 = vadd.xlane.f32.xlu0 %v1232
    %v1234 = vpop.xlane.xlu0 %1233
    %v1235 = vmul.f32 %v1231, %v149
    %v1236 = vmul.f32 %v1234, %v149
    %v1237 = vsub.f32 %v1227, %v1235
    %v1238 = vsub.f32 %v1228, %v1236
    %v1239 = vmul.f32 %v1237, %v1237
    %v1240 = vmul.f32 %v1238, %v1238
    %v1241 = vsel %vm136, %v1239, 0.0
    %1242 = vadd.xlane.f32.xlu0 %v1241
    %v1243 = vpop.xlane.xlu0 %1242
    %v1244 = vsel %vm136, %v1240, 0.0
    %1245 = vadd.xlane.f32.xlu0 %v1244
    %v1246 = vpop.xlane.xlu0 %1245
    %v1247 = vmul.f32 %v1243, %v149
    %v1248 = vmul.f32 %v1246, %v149
    %v1249 = vadd.f32 %v1247, 1e-05
    %v1250 = vadd.f32 %v1248, 1e-05
    %v1251 = vrsqrt.pop %v1249
    %v1252 = vmul.f32 %v1251, %v1249
    %v1253 = vmul.f32 %v1252, %v1251
    %v1254 = vmul.f32 0.5, %v1253
    %v1255 = vsub.f32 1.5, %v1254
    %v1256 = vmul.f32 %v1251, %v1255
    %vm1257 = vweird.f32 %v1249
    %vm1258 = vweird.f32 %v1251
    %vm1259 = vmor %vm1257, %vm1258
    %v1260 = vsel %vm1259, %v1251, %v1256
    %v1261 = vrsqrt.pop %v1250
    %v1262 = vmul.f32 %v1261, %v1250
    %v1263 = vmul.f32 %v1262, %v1261
    %v1264 = vmul.f32 0.5, %v1263
    %v1265 = vsub.f32 1.5, %v1264
    %v1266 = vmul.f32 %v1261, %v1265
    %vm1267 = vweird.f32 %v1250
    %vm1268 = vweird.f32 %v1261
    %vm1269 = vmor %vm1267, %vm1268
    %v1270 = vsel %vm1269, %v1261, %v1266
    %v1271 = vmul.f32 %v1237, %v1260
    %v1272 = vmul.f32 %v1238, %v1270
    %v1273 = vperm.slane %v768, 2
    %v1274 = vmul.f32 %v1271, %v1273
    %v1275 = vmul.f32 %v1272, %v1273
    %v1276 = vperm.slane %v768, 3
    %v1277 = vadd.f32 %v1274, %v1276
    %v1278 = vadd.f32 %v1275, %v1276
    %s1279 = scalar_lea.vmem [#allocation10], 32
    %v1280 = vld [vmem:[%s1279] sm:$0xff]
    %v1281 = vld [vmem:[%s1279 + $0x8] sm:$0xff]
    %v1282 = vld [vmem:[%s1279 + $0x10] sm:$0xff]
    %v1283 = vld [vmem:[%s1279 + $0x18] sm:$0xff]
    %v1285 = vsel %vm136, %v1277, 0
    %v1288 = vsel %vm136, %v1278, 0
    %1290 = vmatpush.msra.mxu0 0.0
    %1291 = vmatpush.msra.mxu0 0.0
    %1292 = vmatpush.msra.mxu0 0.0
    %1293 = vmatpush.msra.mxu0 0.0
    %1294 = vmatpush.msra.mxu0 0.0
    %1295 = vmatpush.msra.mxu0 0.0
    %1296 = vmatpush.msra.mxu0 0.0
    %1297 = vmatpush.msra.mxu0 0.0
    %1298 = vmatpush.msra.mxu0 0.0
    %1299 = vmatpush.msra.mxu0 0.0
    %1300 = vmatpush.msra.mxu0 0.0
    %1301 = vmatpush.msra.mxu0 0.0
    %1302 = vmatpush.msra.mxu0 %v1283
    %1303 = vmatpush.msra.mxu0 %v1282
    %1304 = vmatpush.msra.mxu0 %v1281
    %1305 = vmatpush.msra.mxu0 %v1280
    %1306 = vmatmul.f32.gmra.mxu0 %v1285
    %v1307 = vpop.f32.mrf.mxu0
    %v1308 = vadd.f32 0.0, %v1307
    %1309 = vmatmul.f32.gmra.mxu0 %v1288
    %v1310 = vpop.f32.mrf.mxu0
    %v1311 = vadd.f32 0.0, %v1310
    %1312 = vdwg.mxu0
    %v1313 = vmul.f32 %v1308, %v1308
    %v1314 = vmul.f32 %v1311, %v1311
    %v1315 = vmul.f32 %v1308, %v1313
    %v1316 = vmul.f32 %v1311, %v1314
    %v1317 = vmul.f32 %v1315, 0.044715
    %v1318 = vmul.f32 %v1316, 0.044715
    %v1319 = vadd.f32 %v1308, %v1317
    %v1320 = vadd.f32 %v1311, %v1318
    %v1321 = vmul.f32 %v1319, 0.7978846
    %v1322 = vmul.f32 %v1320, 0.7978846
    %v1323 = vtanh.pop %v1321
    %v1324 = vtanh.pop %v1322
    %v1325 = vadd.f32 %v1323, 1.0
    %v1326 = vadd.f32 %v1324, 1.0
    %v1327 = vmul.f32 %v1325, 0.5
    %v1328 = vmul.f32 %v1326, 0.5
    %v1329 = vmul.f32 %v1308, %v1327
    %v1330 = vmul.f32 %v1311, %v1328
    %s1331 = scalar_lea.vmem %s7, 64
    %v1332 = vld [vmem:[%s1331] sm:$0xff]
    %v1333 = vld [vmem:[%s1331 + $0x8] sm:$0xff]
    %v1334 = vld [vmem:[%s1331 + $0x10] sm:$0xff]
    %v1335 = vld [vmem:[%s1331 + $0x18] sm:$0xff]
    %v1336 = vld [vmem:[%s1331 + $0x20] sm:$0xff]
    %v1337 = vld [vmem:[%s1331 + $0x28] sm:$0xff]
    %v1338 = vld [vmem:[%s1331 + $0x30] sm:$0xff]
    %v1339 = vld [vmem:[%s1331 + $0x38] sm:$0xff]
    %v1341 = vsel %vm735, %v1329, 0
    %v1344 = vsel %vm735, %v1330, 0
    %1346 = vmatpush.msra.mxu0 0.0
    %1347 = vmatpush.msra.mxu0 0.0
    %1348 = vmatpush.msra.mxu0 0.0
    %1349 = vmatpush.msra.mxu0 0.0
    %1350 = vmatpush.msra.mxu0 0.0
    %1351 = vmatpush.msra.mxu0 0.0
    %1352 = vmatpush.msra.mxu0 0.0
    %1353 = vmatpush.msra.mxu0 0.0
    %1354 = vmatpush.msra.mxu0 %v1339
    %1355 = vmatpush.msra.mxu0 %v1338
    %1356 = vmatpush.msra.mxu0 %v1337
    %1357 = vmatpush.msra.mxu0 %v1336
    %1358 = vmatpush.msra.mxu0 %v1335
    %1359 = vmatpush.msra.mxu0 %v1334
    %1360 = vmatpush.msra.mxu0 %v1333
    %1361 = vmatpush.msra.mxu0 %v1332
    %1362 = vmatmul.f32.gmra.mxu0 %v1341
    %v1363 = vpop.f32.mrf.mxu0
    %v1364 = vadd.f32 0.0, %v1363
    %1365 = vmatmul.f32.gmra.mxu0 %v1344
    %v1366 = vpop.f32.mrf.mxu0
    %v1367 = vadd.f32 0.0, %v1366
    %1368 = vdwg.mxu0
    %v1369 = vadd.f32 %v1227, %v1364
    %v1370 = vadd.f32 %v1228, %v1367
    %1371 = vst.msk [vmem:[#allocation13] sm:$0xff] %vm136, %v1369
    %1372 = vst.msk [vmem:[#allocation13 + $0x8] sm:$0xff] %vm136, %v1370
    // Predicated region
    $region62: #{tpu_custom_call.1} parent=1 // pred_check
      _
    $region63: #{tpu_custom_call.1} parent=1 // pred_check_branch
      %1374 = sbr.rel (0) target = $region65
    $region64: #{tpu_custom_call.1} parent=1 // pred_region
      %1376 = vsyncadd [#allocation4], 0
      %s1377 = sshll.u32 [#allocation13], 4
      %s1378 = int_to_ptr.vmem [resolvable:$true] %s1377
      %s1379 = sshll.u32 %s9, 4
      %s1380 = int_to_ptr.hbm [resolvable:$true] %s1379
      %1385 = dma.vmem_to_hbm [thread:$0]  %s1378, 256, %s1380, [#allocation4], 128, 128, 8
    $region65: #{tpu_custom_call.1} parent=1 // pred_fallthru
      _
    // Predicated region
    $region66: #{tpu_custom_call.1} parent=1 // pred_check
      _
    $region67: #{tpu_custom_call.1} parent=1 // pred_check_branch
      %1387 = sbr.rel (0) target = $region69
    $region68: #{tpu_custom_call.1} parent=1 // pred_region
      %1389 = dma.done [#allocation4], 256
    $region69: #{tpu_custom_call.1} parent=1 // pred_fallthru
      _
    %1390 = vsyncpa [#allocation3], 1
    %1391 = vsyncpa [#allocation6], 1
    %1392 = vsyncpa [#allocation9], 1
    %1393 = vsyncpa [#allocation12], 1
    %1394 = vsyncpa [#allocation4], 1

</llo_original>
